<compile_context>
chip_gen: v7x
topology: tpu7x:2x2x1
jax: 0.10.0
libtpu: 0.0.40
codegen_flags: <defaults>
</compile_context>

<pallas_src>
import jax
import jax.numpy as jnp
from jax.experimental import pallas as pl
from jax.experimental.pallas import tpu as pltpu

NUM_BLOCKS = 3
SCALING_FACTOR = 0.3

_LANE = 128
_SUBLANE_BF16 = 16  # bf16 packs 2 rows per sublane -> keep row tiles 16-aligned


def _swish(x):
    return x * jax.nn.sigmoid(x)


def _round_up(n, m):
    return ((n + m - 1) // m) * m


def _pad_to(a, shape):
    pads = [(0, s - d) for d, s in zip(a.shape, shape)]
    if all(p == (0, 0) for p in pads):
        return a
    return jnp.pad(a, pads)


def _pad_feature_dim(d):
    """Lane-pad to 128; align to 256 (v6e/v7x MXU width) when the waste is small."""
    p128 = _round_up(d, _LANE)
    p256 = _round_up(d, 2 * _LANE)
    if d >= 224 and p128 % 256 != 0 and (p256 - d) <= 0.15 * p256:
        return p256
    return p128


def _vmem_capacity_bytes():
    try:
        cap = int(getattr(pltpu.get_tpu_info(), "vmem_capacity_bytes", 0))
        if cap > 0:
            return cap
    except Exception:
        pass
    return 64 << 20  # conservative default: v7x per-TensorCore VMEM


def resnet_kernel(x_ref, w_in_ref, b_in_ref,
                  w1s_ref, b1s_ref, w2s_ref, b2s_ref,
                  w_out_ref, b_out_ref, o_ref):
    # MXU operands in bf16; accumulation, Swish, bias adds and the residual
    # update stay in f32.
    h = _swish(
        jnp.dot(x_ref[...].astype(jnp.bfloat16), w_in_ref[...],
                preferred_element_type=jnp.float32)
        + b_in_ref[...]
    )
    for i in range(NUM_BLOCKS):            # static unroll; biases read once/block
        b1 = b1s_ref[i]
        b2 = b2s_ref[i]
        t = _swish(
            jnp.dot(h.astype(jnp.bfloat16), w1s_ref[i],
                    preferred_element_type=jnp.float32) + b1
        )
        t = jnp.dot(t.astype(jnp.bfloat16), w2s_ref[i],
                    preferred_element_type=jnp.float32) + b2
        h = h + SCALING_FACTOR * t
    o_ref[...] = (
        jnp.dot(h.astype(jnp.bfloat16), w_out_ref[...],
                preferred_element_type=jnp.float32)
        + b_out_ref[...]
    ).astype(o_ref.dtype)


def resnet_forward(x, params):
    batch, in_dim = x.shape
    hid = params["w_in"].shape[1]
    out_dim = params["w_out"].shape[1]

    # ---- MXU / lane friendly padded feature dims ---------------------------
    in_p = _pad_feature_dim(in_dim)
    hid_p = _pad_feature_dim(hid)
    out_p = _pad_feature_dim(out_dim)

    # ---- batch tile ---------------------------------------------------------
    # Large tiles amortize per-grid-step overhead; keep >=2 grid steps when the
    # batch allows so the "parallel" axis can shard across v7x TensorCores.
    tb = min(512, _round_up(batch, _SUBLANE_BF16))
    if batch >= 2 * _SUBLANE_BF16:
        tb = min(tb, _round_up(pl.cdiv(batch, 2), _SUBLANE_BF16))
    batch_p = _round_up(batch, tb)
    grid = (batch_p // tb,)

    # ---- pad (exact) + cast weights to bf16 ---------------------------------
    # Padded feature columns stay exactly 0 end-to-end (Swish(0) = 0); padded
    # batch rows produce garbage that is sliced off below.
    xp = _pad_to(x, (batch_p, in_p))
    w_in = _pad_to(params["w_in"], (in_p, hid_p)).astype(jnp.bfloat16)
    w1s = _pad_to(params["w1s"], (NUM_BLOCKS, hid_p, hid_p)).astype(jnp.bfloat16)
    w2s = _pad_to(params["w2s"], (NUM_BLOCKS, hid_p, hid_p)).astype(jnp.bfloat16)
    w_out = _pad_to(params["w_out"], (hid_p, out_p)).astype(jnp.bfloat16)
    b_in = _pad_to(params["b_in"], (1, hid_p)).astype(jnp.float32)
    b1s = _pad_to(params["b1s"], (NUM_BLOCKS, 1, hid_p)).astype(jnp.float32)
    b2s = _pad_to(params["b2s"], (NUM_BLOCKS, 1, hid_p)).astype(jnp.float32)
    b_out = _pad_to(params["b_out"], (1, out_p)).astype(jnp.float32)

    # ---- VMEM budget (per TensorCore) ---------------------------------------
    vmem_cap = _vmem_capacity_bytes()
    weight_bytes = 2 * (in_p * hid_p + 2 * NUM_BLOCKS * hid_p * hid_p
                        + hid_p * out_p)                        # bf16 weights
    bias_bytes = 4 * (hid_p * (1 + 2 * NUM_BLOCKS) + out_p)     # f32 biases
    # x / o tiles double-buffered (f32) + in-kernel f32 h/t + bf16 temporaries
    act_bytes = 4 * tb * (2 * in_p + 2 * out_p) + tb * hid_p * (4 * 2 + 2 * 2)

    # TODO(synk): if single-buffered bf16 weights ever exceed ~85% of per-TC
    # VMEM (very large hidden_dim on v7x's 64 MiB), switch to a 2-D grid that
    # streams w1s/w2s per residual block instead of keeping all weights
    # resident; not needed at these sizes.

    flops = 2 * batch_p * (in_p * hid_p + 2 * NUM_BLOCKS * hid_p * hid_p
                           + hid_p * out_p)
    transcendentals = batch_p * hid_p * (1 + NUM_BLOCKS)        # sigmoids
    bytes_accessed = weight_bytes + bias_bytes + 4 * batch_p * (in_p + out_p)

    def build(single_buffer_weights):
        if single_buffer_weights:
            const2 = lambda s: pl.BlockSpec(s, lambda i: (0, 0),
                                            pipeline_mode=pl.Buffered(1))
            const3 = lambda s: pl.BlockSpec(s, lambda i: (0, 0, 0),
                                            pipeline_mode=pl.Buffered(1))
            n_buf = 1
        else:
            const2 = lambda s: pl.BlockSpec(s, lambda i: (0, 0))
            const3 = lambda s: pl.BlockSpec(s, lambda i: (0, 0, 0))
            n_buf = 2
        needed = n_buf * (weight_bytes + bias_bytes) + act_bytes
        vmem_limit = min(max(int(needed * 1.3) + (4 << 20), 16 << 20),
                         int(0.85 * vmem_cap))
        return pl.pallas_call(
            resnet_kernel,
            out_shape=jax.ShapeDtypeStruct((batch_p, out_p), x.dtype),
            grid_spec=pltpu.PrefetchScalarGridSpec(
                num_scalar_prefetch=0,
                grid=grid,
                in_specs=[
                    pl.BlockSpec((tb, in_p), lambda i: (i, 0)),
                    const2((in_p, hid_p)),
                    const2((1, hid_p)),
                    const3((NUM_BLOCKS, hid_p, hid_p)),
                    const3((NUM_BLOCKS, 1, hid_p)),
                    const3((NUM_BLOCKS, hid_p, hid_p)),
                    const3((NUM_BLOCKS, 1, hid_p)),
                    const2((hid_p, out_p)),
                    const2((1, out_p)),
                ],
                out_specs=pl.BlockSpec((tb, out_p), lambda i: (i, 0)),
            ),
            compiler_params=pltpu.CompilerParams(
                dimension_semantics=("parallel",),
                vmem_limit_bytes=int(vmem_limit),
            ),
            cost_estimate=pl.CostEstimate(
                flops=int(flops),
                transcendentals=int(transcendentals),
                bytes_accessed=int(bytes_accessed),
            ),
        )

    args = (xp, w_in, b_in, w1s, b1s, w2s, b2s, w_out, b_out)
    try:
        out_padded = build(single_buffer_weights=True)(*args)
    except Exception:
        # Fallback: default (double-buffered) weight specs if Buffered(1) is
        # rejected by this Pallas/Mosaic build.
        out_padded = build(single_buffer_weights=False)(*args)

    return out_padded[:batch, :out_dim]


def init_params(key, input_dim, hidden_dim, output_dim):
    ks = jax.random.split(key, 10)

    def u(k, shape, fan_in):
        bound = 1.0 / jnp.sqrt(fan_in)
        return jax.random.uniform(k, shape, jnp.float32, -bound, bound)

    return {
        "w_in":  u(ks[0], (input_dim, hidden_dim), input_dim),
        "b_in":  u(ks[1], (1, hidden_dim), input_dim),
        "w1s":   u(ks[2], (NUM_BLOCKS, hidden_dim, hidden_dim), hidden_dim),
        "b1s":   u(ks[3], (NUM_BLOCKS, 1, hidden_dim), hidden_dim),
        "w2s":   u(ks[4], (NUM_BLOCKS, hidden_dim, hidden_dim), hidden_dim),
        "b2s":   u(ks[5], (NUM_BLOCKS, 1, hidden_dim), hidden_dim),
        "w_out": u(ks[6], (hidden_dim, output_dim), hidden_dim),
        "b_out": u(ks[7], (1, output_dim), hidden_dim),
    }


def resnet_reference(x, params, matmul_dtype=jnp.float32):
    """Pure-JAX reference; matmul_dtype=bf16 mirrors the kernel's MXU precision."""
    def mm(a, w):
        return jnp.dot(a.astype(matmul_dtype), w.astype(matmul_dtype),
                       preferred_element_type=jnp.float32)
    h = _swish(mm(x, params["w_in"]) + params["b_in"])
    for i in range(NUM_BLOCKS):
        t = _swish(mm(h, params["w1s"][i]) + params["b1s"][i])
        t = mm(t, params["w2s"][i]) + params["b2s"][i]
        h = h + SCALING_FACTOR * t
    return mm(h, params["w_out"]) + params["b_out"]


if __name__ == "__main__":
    batch, input_dim, hidden_dim, output_dim = 8, 4, 32, 4

    key = jax.random.PRNGKey(0)
    k_x, k_p = jax.random.split(key)
    x = jax.random.normal(k_x, (batch, input_dim), jnp.float32)
    params = init_params(k_p, input_dim, hidden_dim, output_dim)

    out = resnet_forward(x, params)
    out = jax.block_until_ready(out)
    assert out.shape == (batch, output_dim)

    # Strict check against a reference with the same bf16-at-the-MXU policy.
    ref_bf16 = resnet_reference(x, params, matmul_dtype=jnp.bfloat16)
    assert jnp.allclose(out, ref_bf16, atol=1e-3, rtol=1e-3), \
        "mismatch vs bf16-matched reference"

    # Sanity check against the full-f32 reference (loose: bf16 MXU cast).
    ref_f32 = resnet_reference(x, params, matmul_dtype=jnp.float32)
    assert jnp.allclose(out, ref_f32, atol=1e-1, rtol=1e-1), \
        "mismatch vs f32 reference"

    print("KERNEL_OK")
</pallas_src>

<mosaic_0001>
module attributes {stable_mosaic.version = 11 : i64} {
  func.func @resnet_kernel(%arg0: i32, %arg1: memref<16x128xf32, #tpu.memory_space<vmem>>, %arg2: memref<128x128xbf16, #tpu.memory_space<vmem>>, %arg3: memref<1x128xf32, #tpu.memory_space<vmem>>, %arg4: memref<3x128x128xbf16, #tpu.memory_space<vmem>>, %arg5: memref<3x1x128xf32, #tpu.memory_space<vmem>>, %arg6: memref<3x128x128xbf16, #tpu.memory_space<vmem>>, %arg7: memref<3x1x128xf32, #tpu.memory_space<vmem>>, %arg8: memref<128x128xbf16, #tpu.memory_space<vmem>>, %arg9: memref<1x128xf32, #tpu.memory_space<vmem>>, %arg10: memref<16x128xf32, #tpu.memory_space<vmem>>) attributes {dimension_semantics = [#tpu.dimension_semantics<parallel>], iteration_bounds = array<i64: 1>, scalar_prefetch = 0 : i64, scratch_operands = 0 : i64, tpu.core_type = #tpu.core_type<tc>, window_params = [{transform_indices = @transform_0, window_bounds = array<i64: 16, 128>}, {pipeline_mode = #tpu.pipeline_mode<synchronous>, transform_indices = @transform_1, window_bounds = array<i64: 128, 128>}, {pipeline_mode = #tpu.pipeline_mode<synchronous>, transform_indices = @transform_2, window_bounds = array<i64: 1, 128>}, {pipeline_mode = #tpu.pipeline_mode<synchronous>, transform_indices = @transform_3, window_bounds = array<i64: 3, 128, 128>}, {pipeline_mode = #tpu.pipeline_mode<synchronous>, transform_indices = @transform_4, window_bounds = array<i64: 3, 1, 128>}, {pipeline_mode = #tpu.pipeline_mode<synchronous>, transform_indices = @transform_5, window_bounds = array<i64: 3, 128, 128>}, {pipeline_mode = #tpu.pipeline_mode<synchronous>, transform_indices = @transform_6, window_bounds = array<i64: 3, 1, 128>}, {pipeline_mode = #tpu.pipeline_mode<synchronous>, transform_indices = @transform_7, window_bounds = array<i64: 128, 128>}, {pipeline_mode = #tpu.pipeline_mode<synchronous>, transform_indices = @transform_8, window_bounds = array<i64: 1, 128>}, {transform_indices = @transform_9, window_bounds = array<i64: 16, 128>}]} {
    %c0 = arith.constant 0 : index
    %c0_0 = arith.constant 0 : index
    %0 = vector.load %arg1[%c0, %c0_0] : memref<16x128xf32, #tpu.memory_space<vmem>>, vector<16x128xf32>
    %1 = arith.truncf %0 : vector<16x128xf32> to vector<16x128xbf16>
    %c0_1 = arith.constant 0 : index
    %c0_2 = arith.constant 0 : index
    %2 = vector.load %arg2[%c0_1, %c0_2] : memref<128x128xbf16, #tpu.memory_space<vmem>>, vector<128x128xbf16>
    %cst = arith.constant dense<0.000000e+00> : vector<16x128xf32>
    %3 = tpu.matmul %1, %2, %cst {dimension_numbers = #tpu.dot_dimension_numbers<[1], [0], [0], [1], [0, 0, 1, 1], [], []>} : vector<16x128xbf16>, vector<128x128xbf16>, vector<16x128xf32> -> vector<16x128xf32>
    %c0_3 = arith.constant 0 : index
    %c0_4 = arith.constant 0 : index
    %4 = vector.load %arg3[%c0_3, %c0_4] : memref<1x128xf32, #tpu.memory_space<vmem>>, vector<1x128xf32>
    %5 = vector.broadcast %4 : vector<1x128xf32> to vector<16x128xf32>
    %6 = arith.addf %3, %5 : vector<16x128xf32>
    %7 = arith.negf %6 : vector<16x128xf32>
    %8 = math.exp %7 : vector<16x128xf32>
    %cst_5 = arith.constant 1.000000e+00 : f32
    %9 = vector.broadcast %cst_5 : f32 to vector<16x128xf32>
    %10 = arith.addf %9, %8 : vector<16x128xf32>
    %11 = arith.divf %9, %10 : vector<16x128xf32>
    %12 = arith.mulf %6, %11 : vector<16x128xf32>
    %c0_6 = arith.constant 0 : index
    %c0_7 = arith.constant 0 : index
    %c0_8 = arith.constant 0 : index
    %13 = vector.load %arg5[%c0_6, %c0_7, %c0_8] : memref<3x1x128xf32, #tpu.memory_space<vmem>>, vector<1x1x128xf32>
    %14 = vector.shape_cast %13 : vector<1x1x128xf32> to vector<1x128xf32>
    %c0_9 = arith.constant 0 : index
    %c0_10 = arith.constant 0 : index
    %c0_11 = arith.constant 0 : index
    %15 = vector.load %arg7[%c0_9, %c0_10, %c0_11] : memref<3x1x128xf32, #tpu.memory_space<vmem>>, vector<1x1x128xf32>
    %16 = vector.shape_cast %15 : vector<1x1x128xf32> to vector<1x128xf32>
    %17 = arith.truncf %12 : vector<16x128xf32> to vector<16x128xbf16>
    %c0_12 = arith.constant 0 : index
    %c0_13 = arith.constant 0 : index
    %c0_14 = arith.constant 0 : index
    %18 = vector.load %arg4[%c0_12, %c0_13, %c0_14] : memref<3x128x128xbf16, #tpu.memory_space<vmem>>, vector<1x128x128xbf16>
    %19 = vector.shape_cast %18 : vector<1x128x128xbf16> to vector<128x128xbf16>
    %cst_15 = arith.constant dense<0.000000e+00> : vector<16x128xf32>
    %20 = tpu.matmul %17, %19, %cst_15 {dimension_numbers = #tpu.dot_dimension_numbers<[1], [0], [0], [1], [0, 0, 1, 1], [], []>} : vector<16x128xbf16>, vector<128x128xbf16>, vector<16x128xf32> -> vector<16x128xf32>
    %21 = vector.broadcast %14 : vector<1x128xf32> to vector<16x128xf32>
    %22 = arith.addf %20, %21 : vector<16x128xf32>
    %23 = arith.negf %22 : vector<16x128xf32>
    %24 = math.exp %23 : vector<16x128xf32>
    %cst_16 = arith.constant 1.000000e+00 : f32
    %25 = vector.broadcast %cst_16 : f32 to vector<16x128xf32>
    %26 = arith.addf %25, %24 : vector<16x128xf32>
    %27 = arith.divf %25, %26 : vector<16x128xf32>
    %28 = arith.mulf %22, %27 : vector<16x128xf32>
    %29 = arith.truncf %28 : vector<16x128xf32> to vector<16x128xbf16>
    %c0_17 = arith.constant 0 : index
    %c0_18 = arith.constant 0 : index
    %c0_19 = arith.constant 0 : index
    %30 = vector.load %arg6[%c0_17, %c0_18, %c0_19] : memref<3x128x128xbf16, #tpu.memory_space<vmem>>, vector<1x128x128xbf16>
    %31 = vector.shape_cast %30 : vector<1x128x128xbf16> to vector<128x128xbf16>
    %cst_20 = arith.constant dense<0.000000e+00> : vector<16x128xf32>
    %32 = tpu.matmul %29, %31, %cst_20 {dimension_numbers = #tpu.dot_dimension_numbers<[1], [0], [0], [1], [0, 0, 1, 1], [], []>} : vector<16x128xbf16>, vector<128x128xbf16>, vector<16x128xf32> -> vector<16x128xf32>
    %33 = vector.broadcast %16 : vector<1x128xf32> to vector<16x128xf32>
    %34 = arith.addf %32, %33 : vector<16x128xf32>
    %cst_21 = arith.constant 3.000000e-01 : f32
    %35 = vector.broadcast %cst_21 : f32 to vector<16x128xf32>
    %36 = arith.mulf %35, %34 : vector<16x128xf32>
    %37 = arith.addf %12, %36 : vector<16x128xf32>
    %c1 = arith.constant 1 : index
    %c0_22 = arith.constant 0 : index
    %c0_23 = arith.constant 0 : index
    %38 = vector.load %arg5[%c1, %c0_22, %c0_23] : memref<3x1x128xf32, #tpu.memory_space<vmem>>, vector<1x1x128xf32>
    %39 = vector.shape_cast %38 : vector<1x1x128xf32> to vector<1x128xf32>
    %c1_24 = arith.constant 1 : index
    %c0_25 = arith.constant 0 : index
    %c0_26 = arith.constant 0 : index
    %40 = vector.load %arg7[%c1_24, %c0_25, %c0_26] : memref<3x1x128xf32, #tpu.memory_space<vmem>>, vector<1x1x128xf32>
    %41 = vector.shape_cast %40 : vector<1x1x128xf32> to vector<1x128xf32>
    %42 = arith.truncf %37 : vector<16x128xf32> to vector<16x128xbf16>
    %c1_27 = arith.constant 1 : index
    %c0_28 = arith.constant 0 : index
    %c0_29 = arith.constant 0 : index
    %43 = vector.load %arg4[%c1_27, %c0_28, %c0_29] : memref<3x128x128xbf16, #tpu.memory_space<vmem>>, vector<1x128x128xbf16>
    %44 = vector.shape_cast %43 : vector<1x128x128xbf16> to vector<128x128xbf16>
    %cst_30 = arith.constant dense<0.000000e+00> : vector<16x128xf32>
    %45 = tpu.matmul %42, %44, %cst_30 {dimension_numbers = #tpu.dot_dimension_numbers<[1], [0], [0], [1], [0, 0, 1, 1], [], []>} : vector<16x128xbf16>, vector<128x128xbf16>, vector<16x128xf32> -> vector<16x128xf32>
    %46 = vector.broadcast %39 : vector<1x128xf32> to vector<16x128xf32>
    %47 = arith.addf %45, %46 : vector<16x128xf32>
    %48 = arith.negf %47 : vector<16x128xf32>
    %49 = math.exp %48 : vector<16x128xf32>
    %cst_31 = arith.constant 1.000000e+00 : f32
    %50 = vector.broadcast %cst_31 : f32 to vector<16x128xf32>
    %51 = arith.addf %50, %49 : vector<16x128xf32>
    %52 = arith.divf %50, %51 : vector<16x128xf32>
    %53 = arith.mulf %47, %52 : vector<16x128xf32>
    %54 = arith.truncf %53 : vector<16x128xf32> to vector<16x128xbf16>
    %c1_32 = arith.constant 1 : index
    %c0_33 = arith.constant 0 : index
    %c0_34 = arith.constant 0 : index
    %55 = vector.load %arg6[%c1_32, %c0_33, %c0_34] : memref<3x128x128xbf16, #tpu.memory_space<vmem>>, vector<1x128x128xbf16>
    %56 = vector.shape_cast %55 : vector<1x128x128xbf16> to vector<128x128xbf16>
    %cst_35 = arith.constant dense<0.000000e+00> : vector<16x128xf32>
    %57 = tpu.matmul %54, %56, %cst_35 {dimension_numbers = #tpu.dot_dimension_numbers<[1], [0], [0], [1], [0, 0, 1, 1], [], []>} : vector<16x128xbf16>, vector<128x128xbf16>, vector<16x128xf32> -> vector<16x128xf32>
    %58 = vector.broadcast %41 : vector<1x128xf32> to vector<16x128xf32>
    %59 = arith.addf %57, %58 : vector<16x128xf32>
    %cst_36 = arith.constant 3.000000e-01 : f32
    %60 = vector.broadcast %cst_36 : f32 to vector<16x128xf32>
    %61 = arith.mulf %60, %59 : vector<16x128xf32>
    %62 = arith.addf %37, %61 : vector<16x128xf32>
    %c2 = arith.constant 2 : index
    %c0_37 = arith.constant 0 : index
    %c0_38 = arith.constant 0 : index
    %63 = vector.load %arg5[%c2, %c0_37, %c0_38] : memref<3x1x128xf32, #tpu.memory_space<vmem>>, vector<1x1x128xf32>
    %64 = vector.shape_cast %63 : vector<1x1x128xf32> to vector<1x128xf32>
    %c2_39 = arith.constant 2 : index
    %c0_40 = arith.constant 0 : index
    %c0_41 = arith.constant 0 : index
    %65 = vector.load %arg7[%c2_39, %c0_40, %c0_41] : memref<3x1x128xf32, #tpu.memory_space<vmem>>, vector<1x1x128xf32>
    %66 = vector.shape_cast %65 : vector<1x1x128xf32> to vector<1x128xf32>
    %67 = arith.truncf %62 : vector<16x128xf32> to vector<16x128xbf16>
    %c2_42 = arith.constant 2 : index
    %c0_43 = arith.constant 0 : index
    %c0_44 = arith.constant 0 : index
    %68 = vector.load %arg4[%c2_42, %c0_43, %c0_44] : memref<3x128x128xbf16, #tpu.memory_space<vmem>>, vector<1x128x128xbf16>
    %69 = vector.shape_cast %68 : vector<1x128x128xbf16> to vector<128x128xbf16>
    %cst_45 = arith.constant dense<0.000000e+00> : vector<16x128xf32>
    %70 = tpu.matmul %67, %69, %cst_45 {dimension_numbers = #tpu.dot_dimension_numbers<[1], [0], [0], [1], [0, 0, 1, 1], [], []>} : vector<16x128xbf16>, vector<128x128xbf16>, vector<16x128xf32> -> vector<16x128xf32>
    %71 = vector.broadcast %64 : vector<1x128xf32> to vector<16x128xf32>
    %72 = arith.addf %70, %71 : vector<16x128xf32>
    %73 = arith.negf %72 : vector<16x128xf32>
    %74 = math.exp %73 : vector<16x128xf32>
    %cst_46 = arith.constant 1.000000e+00 : f32
    %75 = vector.broadcast %cst_46 : f32 to vector<16x128xf32>
    %76 = arith.addf %75, %74 : vector<16x128xf32>
    %77 = arith.divf %75, %76 : vector<16x128xf32>
    %78 = arith.mulf %72, %77 : vector<16x128xf32>
    %79 = arith.truncf %78 : vector<16x128xf32> to vector<16x128xbf16>
    %c2_47 = arith.constant 2 : index
    %c0_48 = arith.constant 0 : index
    %c0_49 = arith.constant 0 : index
    %80 = vector.load %arg6[%c2_47, %c0_48, %c0_49] : memref<3x128x128xbf16, #tpu.memory_space<vmem>>, vector<1x128x128xbf16>
    %81 = vector.shape_cast %80 : vector<1x128x128xbf16> to vector<128x128xbf16>
    %cst_50 = arith.constant dense<0.000000e+00> : vector<16x128xf32>
    %82 = tpu.matmul %79, %81, %cst_50 {dimension_numbers = #tpu.dot_dimension_numbers<[1], [0], [0], [1], [0, 0, 1, 1], [], []>} : vector<16x128xbf16>, vector<128x128xbf16>, vector<16x128xf32> -> vector<16x128xf32>
    %83 = vector.broadcast %66 : vector<1x128xf32> to vector<16x128xf32>
    %84 = arith.addf %82, %83 : vector<16x128xf32>
    %cst_51 = arith.constant 3.000000e-01 : f32
    %85 = vector.broadcast %cst_51 : f32 to vector<16x128xf32>
    %86 = arith.mulf %85, %84 : vector<16x128xf32>
    %87 = arith.addf %62, %86 : vector<16x128xf32>
    %88 = arith.truncf %87 : vector<16x128xf32> to vector<16x128xbf16>
    %c0_52 = arith.constant 0 : index
    %c0_53 = arith.constant 0 : index
    %89 = vector.load %arg8[%c0_52, %c0_53] : memref<128x128xbf16, #tpu.memory_space<vmem>>, vector<128x128xbf16>
    %cst_54 = arith.constant dense<0.000000e+00> : vector<16x128xf32>
    %90 = tpu.matmul %88, %89, %cst_54 {dimension_numbers = #tpu.dot_dimension_numbers<[1], [0], [0], [1], [0, 0, 1, 1], [], []>} : vector<16x128xbf16>, vector<128x128xbf16>, vector<16x128xf32> -> vector<16x128xf32>
    %c0_55 = arith.constant 0 : index
    %c0_56 = arith.constant 0 : index
    %91 = vector.load %arg9[%c0_55, %c0_56] : memref<1x128xf32, #tpu.memory_space<vmem>>, vector<1x128xf32>
    %92 = vector.broadcast %91 : vector<1x128xf32> to vector<16x128xf32>
    %93 = arith.addf %90, %92 : vector<16x128xf32>
    %c0_57 = arith.constant 0 : index
    %c0_58 = arith.constant 0 : index
    %94 = vector.load %arg10[%c0_57, %c0_58] : memref<16x128xf32, #tpu.memory_space<vmem>>, vector<16x128xf32>
    tpu.vector_store %arg10[%c0_57, %c0_58], %93 {strides = array<i32>} : memref<16x128xf32, #tpu.memory_space<vmem>>, vector<16x128xf32>,
    return
  }
  func.func @transform_0(%arg0: i32) -> (i32, i32) {
    %c0_i32 = arith.constant 0 : i32
    %c0_i32_0 = arith.constant 0 : i32
    return %arg0, %c0_i32 : i32, i32
  }
  func.func @transform_1(%arg0: i32) -> (i32, i32) {
    %c0_i32 = arith.constant 0 : i32
    %c0_i32_0 = arith.constant 0 : i32
    %c0_i32_1 = arith.constant 0 : i32
    return %c0_i32, %c0_i32_0 : i32, i32
  }
  func.func @transform_2(%arg0: i32) -> (i32, i32) {
    %c0_i32 = arith.constant 0 : i32
    %c0_i32_0 = arith.constant 0 : i32
    %c0_i32_1 = arith.constant 0 : i32
    return %c0_i32, %c0_i32_0 : i32, i32
  }
  func.func @transform_3(%arg0: i32) -> (i32, i32, i32) {
    %c0_i32 = arith.constant 0 : i32
    %c0_i32_0 = arith.constant 0 : i32
    %c0_i32_1 = arith.constant 0 : i32
    %c0_i32_2 = arith.constant 0 : i32
    return %c0_i32, %c0_i32_0, %c0_i32_1 : i32, i32, i32
  }
  func.func @transform_4(%arg0: i32) -> (i32, i32, i32) {
    %c0_i32 = arith.constant 0 : i32
    %c0_i32_0 = arith.constant 0 : i32
    %c0_i32_1 = arith.constant 0 : i32
    %c0_i32_2 = arith.constant 0 : i32
    return %c0_i32, %c0_i32_0, %c0_i32_1 : i32, i32, i32
  }
  func.func @transform_5(%arg0: i32) -> (i32, i32, i32) {
    %c0_i32 = arith.constant 0 : i32
    %c0_i32_0 = arith.constant 0 : i32
    %c0_i32_1 = arith.constant 0 : i32
    %c0_i32_2 = arith.constant 0 : i32
    return %c0_i32, %c0_i32_0, %c0_i32_1 : i32, i32, i32
  }
  func.func @transform_6(%arg0: i32) -> (i32, i32, i32) {
    %c0_i32 = arith.constant 0 : i32
    %c0_i32_0 = arith.constant 0 : i32
    %c0_i32_1 = arith.constant 0 : i32
    %c0_i32_2 = arith.constant 0 : i32
    return %c0_i32, %c0_i32_0, %c0_i32_1 : i32, i32, i32
  }
  func.func @transform_7(%arg0: i32) -> (i32, i32) {
    %c0_i32 = arith.constant 0 : i32
    %c0_i32_0 = arith.constant 0 : i32
    %c0_i32_1 = arith.constant 0 : i32
    return %c0_i32, %c0_i32_0 : i32, i32
  }
  func.func @transform_8(%arg0: i32) -> (i32, i32) {
    %c0_i32 = arith.constant 0 : i32
    %c0_i32_0 = arith.constant 0 : i32
    %c0_i32_1 = arith.constant 0 : i32
    return %c0_i32, %c0_i32_0 : i32, i32
  }
  func.func @transform_9(%arg0: i32) -> (i32, i32) {
    %c0_i32 = arith.constant 0 : i32
    %c0_i32_0 = arith.constant 0 : i32
    return %arg0, %c0_i32 : i32, i32
  }
}

module attributes {stable_mosaic.version = 11 : i64} {
  func.func @resnet_kernel(%arg0: i32, %arg1: memref<16x128xf32, #tpu.memory_space<vmem>>, %arg2: memref<128x128xbf16, #tpu.memory_space<vmem>>, %arg3: memref<1x128xf32, #tpu.memory_space<vmem>>, %arg4: memref<3x128x128xbf16, #tpu.memory_space<vmem>>, %arg5: memref<3x1x128xf32, #tpu.memory_space<vmem>>, %arg6: memref<3x128x128xbf16, #tpu.memory_space<vmem>>, %arg7: memref<3x1x128xf32, #tpu.memory_space<vmem>>, %arg8: memref<128x128xbf16, #tpu.memory_space<vmem>>, %arg9: memref<1x128xf32, #tpu.memory_space<vmem>>, %arg10: memref<16x128xf32, #tpu.memory_space<vmem>>) attributes {dimension_semantics = [#tpu.dimension_semantics<parallel>], iteration_bounds = array<i64: 1>, scalar_prefetch = 0 : i64, scratch_operands = 0 : i64, tpu.core_type = #tpu.core_type<tc>, window_params = [{transform_indices = @transform_0, window_bounds = array<i64: 16, 128>}, {pipeline_mode = #tpu.pipeline_mode<synchronous>, transform_indices = @transform_1, window_bounds = array<i64: 128, 128>}, {pipeline_mode = #tpu.pipeline_mode<synchronous>, transform_indices = @transform_2, window_bounds = array<i64: 1, 128>}, {pipeline_mode = #tpu.pipeline_mode<synchronous>, transform_indices = @transform_3, window_bounds = array<i64: 3, 128, 128>}, {pipeline_mode = #tpu.pipeline_mode<synchronous>, transform_indices = @transform_4, window_bounds = array<i64: 3, 1, 128>}, {pipeline_mode = #tpu.pipeline_mode<synchronous>, transform_indices = @transform_5, window_bounds = array<i64: 3, 128, 128>}, {pipeline_mode = #tpu.pipeline_mode<synchronous>, transform_indices = @transform_6, window_bounds = array<i64: 3, 1, 128>}, {pipeline_mode = #tpu.pipeline_mode<synchronous>, transform_indices = @transform_7, window_bounds = array<i64: 128, 128>}, {pipeline_mode = #tpu.pipeline_mode<synchronous>, transform_indices = @transform_8, window_bounds = array<i64: 1, 128>}, {transform_indices = @transform_9, window_bounds = array<i64: 16, 128>}]} {
    %c0 = arith.constant 0 : index
    %c0_0 = arith.constant 0 : index
    %0 = vector.load %arg1[%c0, %c0_0] : memref<16x128xf32, #tpu.memory_space<vmem>>, vector<16x128xf32>
    %1 = arith.truncf %0 : vector<16x128xf32> to vector<16x128xbf16>
    %c0_1 = arith.constant 0 : index
    %c0_2 = arith.constant 0 : index
    %2 = vector.load %arg2[%c0_1, %c0_2] : memref<128x128xbf16, #tpu.memory_space<vmem>>, vector<128x128xbf16>
    %cst = arith.constant dense<0.000000e+00> : vector<16x128xf32>
    %3 = tpu.matmul %1, %2, %cst {dimension_numbers = #tpu.dot_dimension_numbers<[1], [0], [0], [1], [0, 0, 1, 1], [], []>} : vector<16x128xbf16>, vector<128x128xbf16>, vector<16x128xf32> -> vector<16x128xf32>
    %c0_3 = arith.constant 0 : index
    %c0_4 = arith.constant 0 : index
    %4 = vector.load %arg3[%c0_3, %c0_4] : memref<1x128xf32, #tpu.memory_space<vmem>>, vector<1x128xf32>
    %5 = vector.broadcast %4 : vector<1x128xf32> to vector<16x128xf32>
    %6 = arith.addf %3, %5 : vector<16x128xf32>
    %7 = arith.negf %6 : vector<16x128xf32>
    %8 = math.exp %7 : vector<16x128xf32>
    %cst_5 = arith.constant 1.000000e+00 : f32
    %9 = vector.broadcast %cst_5 : f32 to vector<16x128xf32>
    %10 = arith.addf %9, %8 : vector<16x128xf32>
    %11 = arith.divf %9, %10 : vector<16x128xf32>
    %12 = arith.mulf %6, %11 : vector<16x128xf32>
    %c0_6 = arith.constant 0 : index
    %c0_7 = arith.constant 0 : index
    %c0_8 = arith.constant 0 : index
    %13 = vector.load %arg5[%c0_6, %c0_7, %c0_8] : memref<3x1x128xf32, #tpu.memory_space<vmem>>, vector<1x1x128xf32>
    %14 = vector.shape_cast %13 : vector<1x1x128xf32> to vector<1x128xf32>
    %c0_9 = arith.constant 0 : index
    %c0_10 = arith.constant 0 : index
    %c0_11 = arith.constant 0 : index
    %15 = vector.load %arg7[%c0_9, %c0_10, %c0_11] : memref<3x1x128xf32, #tpu.memory_space<vmem>>, vector<1x1x128xf32>
    %16 = vector.shape_cast %15 : vector<1x1x128xf32> to vector<1x128xf32>
    %17 = arith.truncf %12 : vector<16x128xf32> to vector<16x128xbf16>
    %c0_12 = arith.constant 0 : index
    %c0_13 = arith.constant 0 : index
    %c0_14 = arith.constant 0 : index
    %18 = vector.load %arg4[%c0_12, %c0_13, %c0_14] : memref<3x128x128xbf16, #tpu.memory_space<vmem>>, vector<1x128x128xbf16>
    %19 = vector.shape_cast %18 : vector<1x128x128xbf16> to vector<128x128xbf16>
    %cst_15 = arith.constant dense<0.000000e+00> : vector<16x128xf32>
    %20 = tpu.matmul %17, %19, %cst_15 {dimension_numbers = #tpu.dot_dimension_numbers<[1], [0], [0], [1], [0, 0, 1, 1], [], []>} : vector<16x128xbf16>, vector<128x128xbf16>, vector<16x128xf32> -> vector<16x128xf32>
    %21 = vector.broadcast %14 : vector<1x128xf32> to vector<16x128xf32>
    %22 = arith.addf %20, %21 : vector<16x128xf32>
    %23 = arith.negf %22 : vector<16x128xf32>
    %24 = math.exp %23 : vector<16x128xf32>
    %cst_16 = arith.constant 1.000000e+00 : f32
    %25 = vector.broadcast %cst_16 : f32 to vector<16x128xf32>
    %26 = arith.addf %25, %24 : vector<16x128xf32>
    %27 = arith.divf %25, %26 : vector<16x128xf32>
    %28 = arith.mulf %22, %27 : vector<16x128xf32>
    %29 = arith.truncf %28 : vector<16x128xf32> to vector<16x128xbf16>
    %c0_17 = arith.constant 0 : index
    %c0_18 = arith.constant 0 : index
    %c0_19 = arith.constant 0 : index
    %30 = vector.load %arg6[%c0_17, %c0_18, %c0_19] : memref<3x128x128xbf16, #tpu.memory_space<vmem>>, vector<1x128x128xbf16>
    %31 = vector.shape_cast %30 : vector<1x128x128xbf16> to vector<128x128xbf16>
    %cst_20 = arith.constant dense<0.000000e+00> : vector<16x128xf32>
    %32 = tpu.matmul %29, %31, %cst_20 {dimension_numbers = #tpu.dot_dimension_numbers<[1], [0], [0], [1], [0, 0, 1, 1], [], []>} : vector<16x128xbf16>, vector<128x128xbf16>, vector<16x128xf32> -> vector<16x128xf32>
    %33 = vector.broadcast %16 : vector<1x128xf32> to vector<16x128xf32>
    %34 = arith.addf %32, %33 : vector<16x128xf32>
    %cst_21 = arith.constant 3.000000e-01 : f32
    %35 = vector.broadcast %cst_21 : f32 to vector<16x128xf32>
    %36 = arith.mulf %35, %34 : vector<16x128xf32>
    %37 = arith.addf %12, %36 : vector<16x128xf32>
    %c1 = arith.constant 1 : index
    %c0_22 = arith.constant 0 : index
    %c0_23 = arith.constant 0 : index
    %38 = vector.load %arg5[%c1, %c0_22, %c0_23] : memref<3x1x128xf32, #tpu.memory_space<vmem>>, vector<1x1x128xf32>
    %39 = vector.shape_cast %38 : vector<1x1x128xf32> to vector<1x128xf32>
    %c1_24 = arith.constant 1 : index
    %c0_25 = arith.constant 0 : index
    %c0_26 = arith.constant 0 : index
    %40 = vector.load %arg7[%c1_24, %c0_25, %c0_26] : memref<3x1x128xf32, #tpu.memory_space<vmem>>, vector<1x1x128xf32>
    %41 = vector.shape_cast %40 : vector<1x1x128xf32> to vector<1x128xf32>
    %42 = arith.truncf %37 : vector<16x128xf32> to vector<16x128xbf16>
    %c1_27 = arith.constant 1 : index
    %c0_28 = arith.constant 0 : index
    %c0_29 = arith.constant 0 : index
    %43 = vector.load %arg4[%c1_27, %c0_28, %c0_29] : memref<3x128x128xbf16, #tpu.memory_space<vmem>>, vector<1x128x128xbf16>
    %44 = vector.shape_cast %43 : vector<1x128x128xbf16> to vector<128x128xbf16>
    %cst_30 = arith.constant dense<0.000000e+00> : vector<16x128xf32>
    %45 = tpu.matmul %42, %44, %cst_30 {dimension_numbers = #tpu.dot_dimension_numbers<[1], [0], [0], [1], [0, 0, 1, 1], [], []>} : vector<16x128xbf16>, vector<128x128xbf16>, vector<16x128xf32> -> vector<16x128xf32>
    %46 = vector.broadcast %39 : vector<1x128xf32> to vector<16x128xf32>
    %47 = arith.addf %45, %46 : vector<16x128xf32>
    %48 = arith.negf %47 : vector<16x128xf32>
    %49 = math.exp %48 : vector<16x128xf32>
    %cst_31 = arith.constant 1.000000e+00 : f32
    %50 = vector.broadcast %cst_31 : f32 to vector<16x128xf32>
    %51 = arith.addf %50, %49 : vector<16x128xf32>
    %52 = arith.divf %50, %51 : vector<16x128xf32>
    %53 = arith.mulf %47, %52 : vector<16x128xf32>
    %54 = arith.truncf %53 : vector<16x128xf32> to vector<16x128xbf16>
    %c1_32 = arith.constant 1 : index
    %c0_33 = arith.constant 0 : index
    %c0_34 = arith.constant 0 : index
    %55 = vector.load %arg6[%c1_32, %c0_33, %c0_34] : memref<3x128x128xbf16, #tpu.memory_space<vmem>>, vector<1x128x128xbf16>
    %56 = vector.shape_cast %55 : vector<1x128x128xbf16> to vector<128x128xbf16>
    %cst_35 = arith.constant dense<0.000000e+00> : vector<16x128xf32>
    %57 = tpu.matmul %54, %56, %cst_35 {dimension_numbers = #tpu.dot_dimension_numbers<[1], [0], [0], [1], [0, 0, 1, 1], [], []>} : vector<16x128xbf16>, vector<128x128xbf16>, vector<16x128xf32> -> vector<16x128xf32>
    %58 = vector.broadcast %41 : vector<1x128xf32> to vector<16x128xf32>
    %59 = arith.addf %57, %58 : vector<16x128xf32>
    %cst_36 = arith.constant 3.000000e-01 : f32
    %60 = vector.broadcast %cst_36 : f32 to vector<16x128xf32>
    %61 = arith.mulf %60, %59 : vector<16x128xf32>
    %62 = arith.addf %37, %61 : vector<16x128xf32>
    %c2 = arith.constant 2 : index
    %c0_37 = arith.constant 0 : index
    %c0_38 = arith.constant 0 : index
    %63 = vector.load %arg5[%c2, %c0_37, %c0_38] : memref<3x1x128xf32, #tpu.memory_space<vmem>>, vector<1x1x128xf32>
    %64 = vector.shape_cast %63 : vector<1x1x128xf32> to vector<1x128xf32>
    %c2_39 = arith.constant 2 : index
    %c0_40 = arith.constant 0 : index
    %c0_41 = arith.constant 0 : index
    %65 = vector.load %arg7[%c2_39, %c0_40, %c0_41] : memref<3x1x128xf32, #tpu.memory_space<vmem>>, vector<1x1x128xf32>
    %66 = vector.shape_cast %65 : vector<1x1x128xf32> to vector<1x128xf32>
    %67 = arith.truncf %62 : vector<16x128xf32> to vector<16x128xbf16>
    %c2_42 = arith.constant 2 : index
    %c0_43 = arith.constant 0 : index
    %c0_44 = arith.constant 0 : index
    %68 = vector.load %arg4[%c2_42, %c0_43, %c0_44] : memref<3x128x128xbf16, #tpu.memory_space<vmem>>, vector<1x128x128xbf16>
    %69 = vector.shape_cast %68 : vector<1x128x128xbf16> to vector<128x128xbf16>
    %cst_45 = arith.constant dense<0.000000e+00> : vector<16x128xf32>
    %70 = tpu.matmul %67, %69, %cst_45 {dimension_numbers = #tpu.dot_dimension_numbers<[1], [0], [0], [1], [0, 0, 1, 1], [], []>} : vector<16x128xbf16>, vector<128x128xbf16>, vector<16x128xf32> -> vector<16x128xf32>
    %71 = vector.broadcast %64 : vector<1x128xf32> to vector<16x128xf32>
    %72 = arith.addf %70, %71 : vector<16x128xf32>
    %73 = arith.negf %72 : vector<16x128xf32>
    %74 = math.exp %73 : vector<16x128xf32>
    %cst_46 = arith.constant 1.000000e+00 : f32
    %75 = vector.broadcast %cst_46 : f32 to vector<16x128xf32>
    %76 = arith.addf %75, %74 : vector<16x128xf32>
    %77 = arith.divf %75, %76 : vector<16x128xf32>
    %78 = arith.mulf %72, %77 : vector<16x128xf32>
    %79 = arith.truncf %78 : vector<16x128xf32> to vector<16x128xbf16>
    %c2_47 = arith.constant 2 : index
    %c0_48 = arith.constant 0 : index
    %c0_49 = arith.constant 0 : index
    %80 = vector.load %arg6[%c2_47, %c0_48, %c0_49] : memref<3x128x128xbf16, #tpu.memory_space<vmem>>, vector<1x128x128xbf16>
    %81 = vector.shape_cast %80 : vector<1x128x128xbf16> to vector<128x128xbf16>
    %cst_50 = arith.constant dense<0.000000e+00> : vector<16x128xf32>
    %82 = tpu.matmul %79, %81, %cst_50 {dimension_numbers = #tpu.dot_dimension_numbers<[1], [0], [0], [1], [0, 0, 1, 1], [], []>} : vector<16x128xbf16>, vector<128x128xbf16>, vector<16x128xf32> -> vector<16x128xf32>
    %83 = vector.broadcast %66 : vector<1x128xf32> to vector<16x128xf32>
    %84 = arith.addf %82, %83 : vector<16x128xf32>
    %cst_51 = arith.constant 3.000000e-01 : f32
    %85 = vector.broadcast %cst_51 : f32 to vector<16x128xf32>
    %86 = arith.mulf %85, %84 : vector<16x128xf32>
    %87 = arith.addf %62, %86 : vector<16x128xf32>
    %88 = arith.truncf %87 : vector<16x128xf32> to vector<16x128xbf16>
    %c0_52 = arith.constant 0 : index
    %c0_53 = arith.constant 0 : index
    %89 = vector.load %arg8[%c0_52, %c0_53] : memref<128x128xbf16, #tpu.memory_space<vmem>>, vector<128x128xbf16>
    %cst_54 = arith.constant dense<0.000000e+00> : vector<16x128xf32>
    %90 = tpu.matmul %88, %89, %cst_54 {dimension_numbers = #tpu.dot_dimension_numbers<[1], [0], [0], [1], [0, 0, 1, 1], [], []>} : vector<16x128xbf16>, vector<128x128xbf16>, vector<16x128xf32> -> vector<16x128xf32>
    %c0_55 = arith.constant 0 : index
    %c0_56 = arith.constant 0 : index
    %91 = vector.load %arg9[%c0_55, %c0_56] : memref<1x128xf32, #tpu.memory_space<vmem>>, vector<1x128xf32>
    %92 = vector.broadcast %91 : vector<1x128xf32> to vector<16x128xf32>
    %93 = arith.addf %90, %92 : vector<16x128xf32>
    %c0_57 = arith.constant 0 : index
    %c0_58 = arith.constant 0 : index
    %94 = vector.load %arg10[%c0_57, %c0_58] : memref<16x128xf32, #tpu.memory_space<vmem>>, vector<16x128xf32>
    tpu.vector_store %arg10[%c0_57, %c0_58], %93 {strides = array<i32>} : memref<16x128xf32, #tpu.memory_space<vmem>>, vector<16x128xf32>,
    return
  }
  func.func @transform_0(%arg0: i32) -> (i32, i32) {
    %c0_i32 = arith.constant 0 : i32
    %c0_i32_0 = arith.constant 0 : i32
    return %arg0, %c0_i32 : i32, i32
  }
  func.func @transform_1(%arg0: i32) -> (i32, i32) {
    %c0_i32 = arith.constant 0 : i32
    %c0_i32_0 = arith.constant 0 : i32
    %c0_i32_1 = arith.constant 0 : i32
    return %c0_i32, %c0_i32_0 : i32, i32
  }
  func.func @transform_2(%arg0: i32) -> (i32, i32) {
    %c0_i32 = arith.constant 0 : i32
    %c0_i32_0 = arith.constant 0 : i32
    %c0_i32_1 = arith.constant 0 : i32
    return %c0_i32, %c0_i32_0 : i32, i32
  }
  func.func @transform_3(%arg0: i32) -> (i32, i32, i32) {
    %c0_i32 = arith.constant 0 : i32
    %c0_i32_0 = arith.constant 0 : i32
    %c0_i32_1 = arith.constant 0 : i32
    %c0_i32_2 = arith.constant 0 : i32
    return %c0_i32, %c0_i32_0, %c0_i32_1 : i32, i32, i32
  }
  func.func @transform_4(%arg0: i32) -> (i32, i32, i32) {
    %c0_i32 = arith.constant 0 : i32
    %c0_i32_0 = arith.constant 0 : i32
    %c0_i32_1 = arith.constant 0 : i32
    %c0_i32_2 = arith.constant 0 : i32
    return %c0_i32, %c0_i32_0, %c0_i32_1 : i32, i32, i32
  }
  func.func @transform_5(%arg0: i32) -> (i32, i32, i32) {
    %c0_i32 = arith.constant 0 : i32
    %c0_i32_0 = arith.constant 0 : i32
    %c0_i32_1 = arith.constant 0 : i32
    %c0_i32_2 = arith.constant 0 : i32
    return %c0_i32, %c0_i32_0, %c0_i32_1 : i32, i32, i32
  }
  func.func @transform_6(%arg0: i32) -> (i32, i32, i32) {
    %c0_i32 = arith.constant 0 : i32
    %c0_i32_0 = arith.constant 0 : i32
    %c0_i32_1 = arith.constant 0 : i32
    %c0_i32_2 = arith.constant 0 : i32
    return %c0_i32, %c0_i32_0, %c0_i32_1 : i32, i32, i32
  }
  func.func @transform_7(%arg0: i32) -> (i32, i32) {
    %c0_i32 = arith.constant 0 : i32
    %c0_i32_0 = arith.constant 0 : i32
    %c0_i32_1 = arith.constant 0 : i32
    return %c0_i32, %c0_i32_0 : i32, i32
  }
  func.func @transform_8(%arg0: i32) -> (i32, i32) {
    %c0_i32 = arith.constant 0 : i32
    %c0_i32_0 = arith.constant 0 : i32
    %c0_i32_1 = arith.constant 0 : i32
    return %c0_i32, %c0_i32_0 : i32, i32
  }
  func.func @transform_9(%arg0: i32) -> (i32, i32) {
    %c0_i32 = arith.constant 0 : i32
    %c0_i32_0 = arith.constant 0 : i32
    return %arg0, %c0_i32 : i32, i32
  }
}

</mosaic_0001>

<llo_original>
// kernel: tpu_custom_call.1
$region0: #{tpu_custom_call.1}
  #allocation0 [shape = 'u32[]', space=smem, size = 0x4, offset = 0x4, fixed_abs, tag = 'smem constant byte address 0x4 - core index']
  #allocation1 [shape = 'u32[144,128]{1,0:T(1,128)}', space=vmem, size = 0x12000, scoped, tag = 'internal scratch']
  %s0 = inlined_call_operand.hbm [shape: f32[16,128], index: 0, kind: input, shape index: {}]
  %s1 = inlined_call_operand.hbm [shape: bf16[128,128], index: 1, kind: input, shape index: {}]
  %s2 = inlined_call_operand.vmem [shape: f32[1,128], index: 2, kind: input, shape index: {}]
  %s3 = inlined_call_operand.hbm [shape: bf16[3,128,128], index: 3, kind: input, shape index: {}]
  %s4 = inlined_call_operand.vmem [shape: f32[3,1,128], index: 4, kind: input, shape index: {}]
  %s5 = inlined_call_operand.hbm [shape: bf16[3,128,128], index: 5, kind: input, shape index: {}]
  %s6 = inlined_call_operand.vmem [shape: f32[3,1,128], index: 6, kind: input, shape index: {}]
  %s7 = inlined_call_operand.hbm [shape: bf16[128,128], index: 7, kind: input, shape index: {}]
  %s8 = inlined_call_operand.vmem [shape: f32[1,128], index: 8, kind: input, shape index: {}]
  %s9 = inlined_call_operand.hbm [shape: f32[16,128], index: 9, kind: output, shape index: {}]
  %s10 = sld [smem:[#allocation0]]
  $region66: #{tpu_custom_call.1} parent=0
    _
  %s12 = ssub.s32 1, %s10
  %s13 = scalar_select 0, %s12, %s10
  $region1: #{tpu_custom_call.1} parent=0
    #allocation2 [shape = 'u8[8192]{0}', space=vmem, size = 0x2000, scoped, tag = 'input window, operand 0, single buffered']
    #allocation3 [shape = 's32[1]{0}', space=sflag, size = 0x4, scoped, tag = 'scoped memory for tpu_custom_call.1']
    #allocation4 [shape = 's32[1]{0}', space=sflag, size = 0x4, scoped, tag = 'scoped memory for tpu_custom_call.1']
    #allocation5 [shape = 'u8[32768]{0}', space=vmem, size = 0x8000, scoped, tag = 'input window, operand 1, single buffered']
    #allocation6 [shape = 's32[1]{0}', space=sflag, size = 0x4, scoped, tag = 'scoped memory for tpu_custom_call.1']
    #allocation7 [shape = 'u8[98304]{0}', space=vmem, size = 0x18000, scoped, tag = 'input window, operand 3, single buffered']
    #allocation8 [shape = 'u8[98304]{0}', space=vmem, size = 0x18000, scoped, tag = 'input window, operand 5, single buffered']
    #allocation9 [shape = 's32[1]{0}', space=sflag, size = 0x4, scoped, tag = 'scoped memory for tpu_custom_call.1']
    #allocation10 [shape = 'u8[32768]{0}', space=vmem, size = 0x8000, scoped, tag = 'input window, operand 7, single buffered']
    #allocation11 [shape = 'u8[8192]{0}', space=vmem, size = 0x2000, scoped, tag = 'output window, operand 0, single buffered']
    %14 = vsyncpa [#allocation3], 0
    %15 = vsyncpa [#allocation6], 0
    %16 = vsyncpa [#allocation9], 0
    %17 = vsyncpa [#allocation4], 0
    // Predicated region
    $region2: #{tpu_custom_call.1} parent=1 // pred_check
      _
    $region3: #{tpu_custom_call.1} parent=1 // pred_check_branch
      %19 = sbr.rel (0) target = $region5
    $region4: #{tpu_custom_call.1} parent=1 // pred_region
      %s21 = ssub.s32 256, 256
      %22 = vsyncadd [#allocation3], %s21
      %s23 = sshll.u32 [#allocation2], 4
      %s24 = int_to_ptr.vmem [resolvable:$true] %s23
      %29 = dma.hbm_to_vmem [thread:$0]  %s0, 256, %s24, [#allocation3], 128, 128, 8
    $region5: #{tpu_custom_call.1} parent=1 // pred_fallthru
      _
    // Predicated region
    $region6: #{tpu_custom_call.1} parent=1 // pred_check
      _
    $region7: #{tpu_custom_call.1} parent=1 // pred_check_branch
      %31 = sbr.rel (0) target = $region9
    $region8: #{tpu_custom_call.1} parent=1 // pred_region
      %s33 = ssub.s32 1024, 1024
      %34 = vsyncadd [#allocation6], %s33
      %s35 = sshll.u32 [#allocation5], 4
      %s36 = int_to_ptr.vmem [resolvable:$true] %s35
      %41 = dma.hbm_to_vmem [thread:$0]  %s1, 1024, %s36, [#allocation6], 64, 64, 4
    $region9: #{tpu_custom_call.1} parent=1 // pred_fallthru
      _
    // Predicated region
    $region10: #{tpu_custom_call.1} parent=1 // pred_check
      _
    $region11: #{tpu_custom_call.1} parent=1 // pred_check_branch
      %43 = sbr.rel (0) target = $region13
    $region12: #{tpu_custom_call.1} parent=1 // pred_region
      _
    $region13: #{tpu_custom_call.1} parent=1 // pred_fallthru
      _
    // Predicated region
    $region14: #{tpu_custom_call.1} parent=1 // pred_check
      _
    $region15: #{tpu_custom_call.1} parent=1 // pred_check_branch
      %45 = sbr.rel (0) target = $region17
    $region16: #{tpu_custom_call.1} parent=1 // pred_region
      %s47 = ssub.s32 3072, 3072
      %48 = vsyncadd [#allocation6], %s47
      %s49 = sshll.u32 [#allocation7], 4
      %s50 = int_to_ptr.vmem [resolvable:$true] %s49
      %55 = dma.hbm_to_vmem [thread:$0]  %s3, 3072, %s50, [#allocation6], 64, 64, 4
    $region17: #{tpu_custom_call.1} parent=1 // pred_fallthru
      _
    // Predicated region
    $region18: #{tpu_custom_call.1} parent=1 // pred_check
      _
    $region19: #{tpu_custom_call.1} parent=1 // pred_check_branch
      %57 = sbr.rel (0) target = $region21
    $region20: #{tpu_custom_call.1} parent=1 // pred_region
      _
    $region21: #{tpu_custom_call.1} parent=1 // pred_fallthru
      _
    // Predicated region
    $region22: #{tpu_custom_call.1} parent=1 // pred_check
      _
    $region23: #{tpu_custom_call.1} parent=1 // pred_check_branch
      %59 = sbr.rel (0) target = $region25
    $region24: #{tpu_custom_call.1} parent=1 // pred_region
      %s61 = ssub.s32 3072, 3072
      %62 = vsyncadd [#allocation9], %s61
      %s63 = sshll.u32 [#allocation8], 4
      %s64 = int_to_ptr.vmem [resolvable:$true] %s63
      %69 = dma.hbm_to_vmem [thread:$0]  %s5, 3072, %s64, [#allocation9], 64, 64, 4
    $region25: #{tpu_custom_call.1} parent=1 // pred_fallthru
      _
    // Predicated region
    $region26: #{tpu_custom_call.1} parent=1 // pred_check
      _
    $region27: #{tpu_custom_call.1} parent=1 // pred_check_branch
      %71 = sbr.rel (0) target = $region29
    $region28: #{tpu_custom_call.1} parent=1 // pred_region
      _
    $region29: #{tpu_custom_call.1} parent=1 // pred_fallthru
      _
    // Predicated region
    $region30: #{tpu_custom_call.1} parent=1 // pred_check
      _
    $region31: #{tpu_custom_call.1} parent=1 // pred_check_branch
      %73 = sbr.rel (0) target = $region33
    $region32: #{tpu_custom_call.1} parent=1 // pred_region
      %s75 = ssub.s32 1024, 1024
      %76 = vsyncadd [#allocation9], %s75
      %s77 = sshll.u32 [#allocation10], 4
      %s78 = int_to_ptr.vmem [resolvable:$true] %s77
      %83 = dma.hbm_to_vmem [thread:$0]  %s7, 1024, %s78, [#allocation9], 64, 64, 4
    $region33: #{tpu_custom_call.1} parent=1 // pred_fallthru
      _
    // Predicated region
    $region34: #{tpu_custom_call.1} parent=1 // pred_check
      _
    $region35: #{tpu_custom_call.1} parent=1 // pred_check_branch
      %85 = sbr.rel (0) target = $region37
    $region36: #{tpu_custom_call.1} parent=1 // pred_region
      _
    $region37: #{tpu_custom_call.1} parent=1 // pred_fallthru
      _
    // Predicated region
    $region38: #{tpu_custom_call.1} parent=1 // pred_check
      _
    $region39: #{tpu_custom_call.1} parent=1 // pred_check_branch
      %87 = sbr.rel (0) target = $region41
    $region40: #{tpu_custom_call.1} parent=1 // pred_region
      %88 = dma.done [#allocation3], 256
    $region41: #{tpu_custom_call.1} parent=1 // pred_fallthru
      _
    // Predicated region
    $region42: #{tpu_custom_call.1} parent=1 // pred_check
      _
    $region43: #{tpu_custom_call.1} parent=1 // pred_check_branch
      %90 = sbr.rel (0) target = $region45
    $region44: #{tpu_custom_call.1} parent=1 // pred_region
      %91 = dma.done [#allocation6], 1024
    $region45: #{tpu_custom_call.1} parent=1 // pred_fallthru
      _
    // Predicated region
    $region46: #{tpu_custom_call.1} parent=1 // pred_check
      _
    $region47: #{tpu_custom_call.1} parent=1 // pred_check_branch
      %93 = sbr.rel (0) target = $region49
    $region48: #{tpu_custom_call.1} parent=1 // pred_region
      %94 = dma.done [#allocation6], 3072
    $region49: #{tpu_custom_call.1} parent=1 // pred_fallthru
      _
    // Predicated region
    $region50: #{tpu_custom_call.1} parent=1 // pred_check
      _
    $region51: #{tpu_custom_call.1} parent=1 // pred_check_branch
      %96 = sbr.rel (0) target = $region53
    $region52: #{tpu_custom_call.1} parent=1 // pred_region
      %97 = dma.done [#allocation9], 3072
    $region53: #{tpu_custom_call.1} parent=1 // pred_fallthru
      _
    // Predicated region
    $region54: #{tpu_custom_call.1} parent=1 // pred_check
      _
    $region55: #{tpu_custom_call.1} parent=1 // pred_check_branch
      %99 = sbr.rel (0) target = $region57
    $region56: #{tpu_custom_call.1} parent=1 // pred_region
      %100 = dma.done [#allocation9], 1024
    $region57: #{tpu_custom_call.1} parent=1 // pred_fallthru
      _
    %v102 = vld [vmem:[#allocation2] sm:$0xff]
    %v103 = vld [vmem:[#allocation2 + $0x8] sm:$0xff]
    %v104 = vpack.c.bf16 %v103, %v102
    %v105 = vld [vmem:[#allocation5] sm:$0xf]
    %v106 = vld [vmem:[#allocation5 + $0x4] sm:$0xf]
    %v107 = vld [vmem:[#allocation5 + $0x8] sm:$0xf]
    %v108 = vld [vmem:[#allocation5 + $0xc] sm:$0xf]
    %v109 = vld [vmem:[#allocation5 + $0x10] sm:$0xf]
    %v110 = vld [vmem:[#allocation5 + $0x14] sm:$0xf]
    %v111 = vld [vmem:[#allocation5 + $0x18] sm:$0xf]
    %v112 = vld [vmem:[#allocation5 + $0x1c] sm:$0xf]
    %v113 = vld [vmem:[#allocation5 + $0x20] sm:$0xf]
    %v114 = vld [vmem:[#allocation5 + $0x24] sm:$0xf]
    %v115 = vld [vmem:[#allocation5 + $0x28] sm:$0xf]
    %v116 = vld [vmem:[#allocation5 + $0x2c] sm:$0xf]
    %v117 = vld [vmem:[#allocation5 + $0x30] sm:$0xf]
    %v118 = vld [vmem:[#allocation5 + $0x34] sm:$0xf]
    %v119 = vld [vmem:[#allocation5 + $0x38] sm:$0xf]
    %v120 = vld [vmem:[#allocation5 + $0x3c] sm:$0xf]
    %v121 = vld [vmem:[%s2] sm:$0x1]
    %v123 = vlaneseq
    %v124 = vshrl.u32 %v123, 7
    %v125 = vsub.s32 0, %v124
    %v126 = vrot.slane %v121, %v125
    %v144 = vunpack.c.l.b16 %v105
    %v145 = vunpack.c.l.b16 %v106
    %v146 = vunpack.c.l.b16 %v107
    %v147 = vunpack.c.l.b16 %v108
    %v148 = vunpack.c.l.b16 %v109
    %v149 = vunpack.c.l.b16 %v110
    %v150 = vunpack.c.l.b16 %v111
    %v151 = vunpack.c.l.b16 %v112
    %v152 = vunpack.c.l.b16 %v113
    %v153 = vunpack.c.l.b16 %v114
    %v154 = vunpack.c.l.b16 %v115
    %v155 = vunpack.c.l.b16 %v116
    %v156 = vunpack.c.l.b16 %v117
    %v157 = vunpack.c.l.b16 %v118
    %v158 = vunpack.c.l.b16 %v119
    %v159 = vunpack.c.l.b16 %v120
    %v160 = vpack.c.b16 %v145, %v144
    %v161 = vpack.c.b16 %v147, %v146
    %v162 = vpack.c.b16 %v149, %v148
    %v163 = vpack.c.b16 %v151, %v150
    %v164 = vpack.c.b16 %v153, %v152
    %v165 = vpack.c.b16 %v155, %v154
    %v166 = vpack.c.b16 %v157, %v156
    %v167 = vpack.c.b16 %v159, %v158
    %176 = vmatprep.subr.bf16.mxu0 0
    %177 = vmatpush1.bf16.msra.mxu0 %v160
    %178 = vmatprep.subr.bf16.mxu0 0
    %179 = vmatpush1.bf16.msra.mxu0 %v161
    %180 = vmatprep.subr.bf16.mxu0 0
    %181 = vmatpush1.bf16.msra.mxu0 %v162
    %182 = vmatprep.subr.bf16.mxu0 0
    %183 = vmatpush1.bf16.msra.mxu0 %v163
    %184 = vmatprep.subr.bf16.mxu0 0
    %185 = vmatpush1.bf16.msra.mxu0 %v164
    %186 = vmatprep.subr.bf16.mxu0 0
    %187 = vmatpush1.bf16.msra.mxu0 %v165
    %188 = vmatprep.subr.bf16.mxu0 0
    %189 = vmatpush1.bf16.msra.mxu0 %v166
    %190 = vmatprep.subr.bf16.mxu0 0
    %191 = vmatpush1.bf16.msra.mxu0 %v167
    %192 = vmatprep.subr.bf16.mxu0 0
    %193 = vmatpush1.bf16.msra.mxu0 0
    %194 = vmatprep.subr.bf16.mxu0 0
    %195 = vmatpush1.bf16.msra.mxu0 0
    %196 = vmatprep.subr.bf16.mxu0 0
    %197 = vmatpush1.bf16.msra.mxu0 0
    %198 = vmatprep.subr.bf16.mxu0 0
    %199 = vmatpush1.bf16.msra.mxu0 0
    %200 = vmatprep.subr.bf16.mxu0 0
    %201 = vmatpush1.bf16.msra.mxu0 0
    %202 = vmatprep.subr.bf16.mxu0 0
    %203 = vmatpush1.bf16.msra.mxu0 0
    %204 = vmatprep.subr.bf16.mxu0 0
    %205 = vmatpush1.bf16.msra.mxu0 0
    %206 = vmatprep.subr.bf16.mxu0 0
    %207 = vmatpush1.bf16.msra.mxu0 0
    %208 = vmatprep.mubr.bf16.mxu0 0
    %209 = vmatmul.mubr.bf16.gmra.mrb[0].mxu0 %v104
    %v210 = vpop.f32.mrb[0].mxu0
    %v211 = vadd.f32 %v126, %v210
    %v212 = vpop.f32.mrb[0].mxu0
    %v213 = vpop.f32.mrb[0].mxu0
    %v214 = vadd.f32 %v126, %v213
    %v215 = vpop.f32.mrb[0].mxu0
    %216 = vdwg.mxu0
    %v217 = vxor.u32 %v211, 2147483648
    %v218 = vxor.u32 %v214, 2147483648
    %v219 = vmul.f32 %v217, 1.442695
    %v220 = vpow.pop %v219
    %v221 = vmul.f32 %v218, 1.442695
    %v222 = vpow.pop %v221
    %v223 = vadd.f32 %v220, 1.0
    %v224 = vadd.f32 %v222, 1.0
    %v225 = vrcp.pop %v223
    %v226 = vmul.f32 1.0, %v225
    %v227 = vrcp.pop %v224
    %v228 = vmul.f32 1.0, %v227
    %v229 = vmul.f32 %v211, %v226
    %v230 = vmul.f32 %v214, %v228
    %v231 = vld [vmem:[%s4] sm:$0x1]
    %v232 = vld [vmem:[%s6] sm:$0x1]
    %v233 = vpack.c.bf16 %v230, %v229
    %v234 = vld [vmem:[#allocation7] sm:$0xf]
    %v235 = vld [vmem:[#allocation7 + $0x4] sm:$0xf]
    %v236 = vld [vmem:[#allocation7 + $0x8] sm:$0xf]
    %v237 = vld [vmem:[#allocation7 + $0xc] sm:$0xf]
    %v238 = vld [vmem:[#allocation7 + $0x10] sm:$0xf]
    %v239 = vld [vmem:[#allocation7 + $0x14] sm:$0xf]
    %v240 = vld [vmem:[#allocation7 + $0x18] sm:$0xf]
    %v241 = vld [vmem:[#allocation7 + $0x1c] sm:$0xf]
    %v242 = vld [vmem:[#allocation7 + $0x20] sm:$0xf]
    %v243 = vld [vmem:[#allocation7 + $0x24] sm:$0xf]
    %v244 = vld [vmem:[#allocation7 + $0x28] sm:$0xf]
    %v245 = vld [vmem:[#allocation7 + $0x2c] sm:$0xf]
    %v246 = vld [vmem:[#allocation7 + $0x30] sm:$0xf]
    %v247 = vld [vmem:[#allocation7 + $0x34] sm:$0xf]
    %v248 = vld [vmem:[#allocation7 + $0x38] sm:$0xf]
    %v249 = vld [vmem:[#allocation7 + $0x3c] sm:$0xf]
    %v251 = vlaneseq
    %v252 = vshrl.u32 %v251, 7
    %v253 = vsub.s32 0, %v252
    %v254 = vrot.slane %v231, %v253
    %v272 = vunpack.c.l.b16 %v234
    %v273 = vunpack.c.l.b16 %v235
    %v274 = vunpack.c.l.b16 %v236
    %v275 = vunpack.c.l.b16 %v237
    %v276 = vunpack.c.l.b16 %v238
    %v277 = vunpack.c.l.b16 %v239
    %v278 = vunpack.c.l.b16 %v240
    %v279 = vunpack.c.l.b16 %v241
    %v280 = vunpack.c.l.b16 %v242
    %v281 = vunpack.c.l.b16 %v243
    %v282 = vunpack.c.l.b16 %v244
    %v283 = vunpack.c.l.b16 %v245
    %v284 = vunpack.c.l.b16 %v246
    %v285 = vunpack.c.l.b16 %v247
    %v286 = vunpack.c.l.b16 %v248
    %v287 = vunpack.c.l.b16 %v249
    %v288 = vpack.c.b16 %v273, %v272
    %v289 = vpack.c.b16 %v275, %v274
    %v290 = vpack.c.b16 %v277, %v276
    %v291 = vpack.c.b16 %v279, %v278
    %v292 = vpack.c.b16 %v281, %v280
    %v293 = vpack.c.b16 %v283, %v282
    %v294 = vpack.c.b16 %v285, %v284
    %v295 = vpack.c.b16 %v287, %v286
    %304 = vmatprep.subr.bf16.mxu0 0
    %305 = vmatpush1.bf16.msra.mxu0 %v288
    %306 = vmatprep.subr.bf16.mxu0 0
    %307 = vmatpush1.bf16.msra.mxu0 %v289
    %308 = vmatprep.subr.bf16.mxu0 0
    %309 = vmatpush1.bf16.msra.mxu0 %v290
    %310 = vmatprep.subr.bf16.mxu0 0
    %311 = vmatpush1.bf16.msra.mxu0 %v291
    %312 = vmatprep.subr.bf16.mxu0 0
    %313 = vmatpush1.bf16.msra.mxu0 %v292
    %314 = vmatprep.subr.bf16.mxu0 0
    %315 = vmatpush1.bf16.msra.mxu0 %v293
    %316 = vmatprep.subr.bf16.mxu0 0
    %317 = vmatpush1.bf16.msra.mxu0 %v294
    %318 = vmatprep.subr.bf16.mxu0 0
    %319 = vmatpush1.bf16.msra.mxu0 %v295
    %320 = vmatprep.subr.bf16.mxu0 0
    %321 = vmatpush1.bf16.msra.mxu0 0
    %322 = vmatprep.subr.bf16.mxu0 0
    %323 = vmatpush1.bf16.msra.mxu0 0
    %324 = vmatprep.subr.bf16.mxu0 0
    %325 = vmatpush1.bf16.msra.mxu0 0
    %326 = vmatprep.subr.bf16.mxu0 0
    %327 = vmatpush1.bf16.msra.mxu0 0
    %328 = vmatprep.subr.bf16.mxu0 0
    %329 = vmatpush1.bf16.msra.mxu0 0
    %330 = vmatprep.subr.bf16.mxu0 0
    %331 = vmatpush1.bf16.msra.mxu0 0
    %332 = vmatprep.subr.bf16.mxu0 0
    %333 = vmatpush1.bf16.msra.mxu0 0
    %334 = vmatprep.subr.bf16.mxu0 0
    %335 = vmatpush1.bf16.msra.mxu0 0
    %336 = vmatprep.mubr.bf16.mxu0 0
    %337 = vmatmul.mubr.bf16.gmra.mrb[0].mxu0 %v233
    %v338 = vpop.f32.mrb[0].mxu0
    %v339 = vadd.f32 %v254, %v338
    %v340 = vpop.f32.mrb[0].mxu0
    %v341 = vpop.f32.mrb[0].mxu0
    %v342 = vadd.f32 %v254, %v341
    %v343 = vpop.f32.mrb[0].mxu0
    %344 = vdwg.mxu0
    %v345 = vxor.u32 %v339, 2147483648
    %v346 = vxor.u32 %v342, 2147483648
    %v347 = vmul.f32 %v345, 1.442695
    %v348 = vpow.pop %v347
    %v349 = vmul.f32 %v346, 1.442695
    %v350 = vpow.pop %v349
    %v351 = vadd.f32 %v348, 1.0
    %v352 = vadd.f32 %v350, 1.0
    %v353 = vrcp.pop %v351
    %v354 = vmul.f32 1.0, %v353
    %v355 = vrcp.pop %v352
    %v356 = vmul.f32 1.0, %v355
    %v357 = vmul.f32 %v339, %v354
    %v358 = vmul.f32 %v342, %v356
    %v359 = vpack.c.bf16 %v358, %v357
    %v360 = vld [vmem:[#allocation8] sm:$0xf]
    %v361 = vld [vmem:[#allocation8 + $0x4] sm:$0xf]
    %v362 = vld [vmem:[#allocation8 + $0x8] sm:$0xf]
    %v363 = vld [vmem:[#allocation8 + $0xc] sm:$0xf]
    %v364 = vld [vmem:[#allocation8 + $0x10] sm:$0xf]
    %v365 = vld [vmem:[#allocation8 + $0x14] sm:$0xf]
    %v366 = vld [vmem:[#allocation8 + $0x18] sm:$0xf]
    %v367 = vld [vmem:[#allocation8 + $0x1c] sm:$0xf]
    %v368 = vld [vmem:[#allocation8 + $0x20] sm:$0xf]
    %v369 = vld [vmem:[#allocation8 + $0x24] sm:$0xf]
    %v370 = vld [vmem:[#allocation8 + $0x28] sm:$0xf]
    %v371 = vld [vmem:[#allocation8 + $0x2c] sm:$0xf]
    %v372 = vld [vmem:[#allocation8 + $0x30] sm:$0xf]
    %v373 = vld [vmem:[#allocation8 + $0x34] sm:$0xf]
    %v374 = vld [vmem:[#allocation8 + $0x38] sm:$0xf]
    %v375 = vld [vmem:[#allocation8 + $0x3c] sm:$0xf]
    %v377 = vlaneseq
    %v378 = vshrl.u32 %v377, 7
    %v379 = vsub.s32 0, %v378
    %v380 = vrot.slane %v232, %v379
    %v398 = vunpack.c.l.b16 %v360
    %v399 = vunpack.c.l.b16 %v361
    %v400 = vunpack.c.l.b16 %v362
    %v401 = vunpack.c.l.b16 %v363
    %v402 = vunpack.c.l.b16 %v364
    %v403 = vunpack.c.l.b16 %v365
    %v404 = vunpack.c.l.b16 %v366
    %v405 = vunpack.c.l.b16 %v367
    %v406 = vunpack.c.l.b16 %v368
    %v407 = vunpack.c.l.b16 %v369
    %v408 = vunpack.c.l.b16 %v370
    %v409 = vunpack.c.l.b16 %v371
    %v410 = vunpack.c.l.b16 %v372
    %v411 = vunpack.c.l.b16 %v373
    %v412 = vunpack.c.l.b16 %v374
    %v413 = vunpack.c.l.b16 %v375
    %v414 = vpack.c.b16 %v399, %v398
    %v415 = vpack.c.b16 %v401, %v400
    %v416 = vpack.c.b16 %v403, %v402
    %v417 = vpack.c.b16 %v405, %v404
    %v418 = vpack.c.b16 %v407, %v406
    %v419 = vpack.c.b16 %v409, %v408
    %v420 = vpack.c.b16 %v411, %v410
    %v421 = vpack.c.b16 %v413, %v412
    %430 = vmatprep.subr.bf16.mxu0 0
    %431 = vmatpush1.bf16.msra.mxu0 %v414
    %432 = vmatprep.subr.bf16.mxu0 0
    %433 = vmatpush1.bf16.msra.mxu0 %v415
    %434 = vmatprep.subr.bf16.mxu0 0
    %435 = vmatpush1.bf16.msra.mxu0 %v416
    %436 = vmatprep.subr.bf16.mxu0 0
    %437 = vmatpush1.bf16.msra.mxu0 %v417
    %438 = vmatprep.subr.bf16.mxu0 0
    %439 = vmatpush1.bf16.msra.mxu0 %v418
    %440 = vmatprep.subr.bf16.mxu0 0
    %441 = vmatpush1.bf16.msra.mxu0 %v419
    %442 = vmatprep.subr.bf16.mxu0 0
    %443 = vmatpush1.bf16.msra.mxu0 %v420
    %444 = vmatprep.subr.bf16.mxu0 0
    %445 = vmatpush1.bf16.msra.mxu0 %v421
    %446 = vmatprep.subr.bf16.mxu0 0
    %447 = vmatpush1.bf16.msra.mxu0 0
    %448 = vmatprep.subr.bf16.mxu0 0
    %449 = vmatpush1.bf16.msra.mxu0 0
    %450 = vmatprep.subr.bf16.mxu0 0
    %451 = vmatpush1.bf16.msra.mxu0 0
    %452 = vmatprep.subr.bf16.mxu0 0
    %453 = vmatpush1.bf16.msra.mxu0 0
    %454 = vmatprep.subr.bf16.mxu0 0
    %455 = vmatpush1.bf16.msra.mxu0 0
    %456 = vmatprep.subr.bf16.mxu0 0
    %457 = vmatpush1.bf16.msra.mxu0 0
    %458 = vmatprep.subr.bf16.mxu0 0
    %459 = vmatpush1.bf16.msra.mxu0 0
    %460 = vmatprep.subr.bf16.mxu0 0
    %461 = vmatpush1.bf16.msra.mxu0 0
    %462 = vmatprep.mubr.bf16.mxu0 0
    %463 = vmatmul.mubr.bf16.gmra.mrb[0].mxu0 %v359
    %v464 = vpop.f32.mrb[0].mxu0
    %v465 = vadd.f32 %v380, %v464
    %v466 = vpop.f32.mrb[0].mxu0
    %v467 = vpop.f32.mrb[0].mxu0
    %v468 = vadd.f32 %v380, %v467
    %v469 = vpop.f32.mrb[0].mxu0
    %470 = vdwg.mxu0
    %v471 = vmul.f32 %v465, 0.3
    %v472 = vmul.f32 %v468, 0.3
    %v473 = vadd.f32 %v229, %v471
    %v474 = vadd.f32 %v230, %v472
    %s475 = scalar_lea.vmem %s4, 1
    %v476 = vld [vmem:[%s475] sm:$0x1]
    %s477 = scalar_lea.vmem %s6, 1
    %v478 = vld [vmem:[%s477] sm:$0x1]
    %v479 = vpack.c.bf16 %v474, %v473
    %s480 = scalar_lea.vmem [#allocation7], 64
    %v481 = vld [vmem:[%s480] sm:$0xf]
    %v482 = vld [vmem:[%s480 + $0x4] sm:$0xf]
    %v483 = vld [vmem:[%s480 + $0x8] sm:$0xf]
    %v484 = vld [vmem:[%s480 + $0xc] sm:$0xf]
    %v485 = vld [vmem:[%s480 + $0x10] sm:$0xf]
    %v486 = vld [vmem:[%s480 + $0x14] sm:$0xf]
    %v487 = vld [vmem:[%s480 + $0x18] sm:$0xf]
    %v488 = vld [vmem:[%s480 + $0x1c] sm:$0xf]
    %v489 = vld [vmem:[%s480 + $0x20] sm:$0xf]
    %v490 = vld [vmem:[%s480 + $0x24] sm:$0xf]
    %v491 = vld [vmem:[%s480 + $0x28] sm:$0xf]
    %v492 = vld [vmem:[%s480 + $0x2c] sm:$0xf]
    %v493 = vld [vmem:[%s480 + $0x30] sm:$0xf]
    %v494 = vld [vmem:[%s480 + $0x34] sm:$0xf]
    %v495 = vld [vmem:[%s480 + $0x38] sm:$0xf]
    %v496 = vld [vmem:[%s480 + $0x3c] sm:$0xf]
    %v498 = vlaneseq
    %v499 = vshrl.u32 %v498, 7
    %v500 = vsub.s32 0, %v499
    %v501 = vrot.slane %v476, %v500
    %v519 = vunpack.c.l.b16 %v481
    %v520 = vunpack.c.l.b16 %v482
    %v521 = vunpack.c.l.b16 %v483
    %v522 = vunpack.c.l.b16 %v484
    %v523 = vunpack.c.l.b16 %v485
    %v524 = vunpack.c.l.b16 %v486
    %v525 = vunpack.c.l.b16 %v487
    %v526 = vunpack.c.l.b16 %v488
    %v527 = vunpack.c.l.b16 %v489
    %v528 = vunpack.c.l.b16 %v490
    %v529 = vunpack.c.l.b16 %v491
    %v530 = vunpack.c.l.b16 %v492
    %v531 = vunpack.c.l.b16 %v493
    %v532 = vunpack.c.l.b16 %v494
    %v533 = vunpack.c.l.b16 %v495
    %v534 = vunpack.c.l.b16 %v496
    %v535 = vpack.c.b16 %v520, %v519
    %v536 = vpack.c.b16 %v522, %v521
    %v537 = vpack.c.b16 %v524, %v523
    %v538 = vpack.c.b16 %v526, %v525
    %v539 = vpack.c.b16 %v528, %v527
    %v540 = vpack.c.b16 %v530, %v529
    %v541 = vpack.c.b16 %v532, %v531
    %v542 = vpack.c.b16 %v534, %v533
    %551 = vmatprep.subr.bf16.mxu0 0
    %552 = vmatpush1.bf16.msra.mxu0 %v535
    %553 = vmatprep.subr.bf16.mxu0 0
    %554 = vmatpush1.bf16.msra.mxu0 %v536
    %555 = vmatprep.subr.bf16.mxu0 0
    %556 = vmatpush1.bf16.msra.mxu0 %v537
    %557 = vmatprep.subr.bf16.mxu0 0
    %558 = vmatpush1.bf16.msra.mxu0 %v538
    %559 = vmatprep.subr.bf16.mxu0 0
    %560 = vmatpush1.bf16.msra.mxu0 %v539
    %561 = vmatprep.subr.bf16.mxu0 0
    %562 = vmatpush1.bf16.msra.mxu0 %v540
    %563 = vmatprep.subr.bf16.mxu0 0
    %564 = vmatpush1.bf16.msra.mxu0 %v541
    %565 = vmatprep.subr.bf16.mxu0 0
    %566 = vmatpush1.bf16.msra.mxu0 %v542
    %567 = vmatprep.subr.bf16.mxu0 0
    %568 = vmatpush1.bf16.msra.mxu0 0
    %569 = vmatprep.subr.bf16.mxu0 0
    %570 = vmatpush1.bf16.msra.mxu0 0
    %571 = vmatprep.subr.bf16.mxu0 0
    %572 = vmatpush1.bf16.msra.mxu0 0
    %573 = vmatprep.subr.bf16.mxu0 0
    %574 = vmatpush1.bf16.msra.mxu0 0
    %575 = vmatprep.subr.bf16.mxu0 0
    %576 = vmatpush1.bf16.msra.mxu0 0
    %577 = vmatprep.subr.bf16.mxu0 0
    %578 = vmatpush1.bf16.msra.mxu0 0
    %579 = vmatprep.subr.bf16.mxu0 0
    %580 = vmatpush1.bf16.msra.mxu0 0
    %581 = vmatprep.subr.bf16.mxu0 0
    %582 = vmatpush1.bf16.msra.mxu0 0
    %583 = vmatprep.mubr.bf16.mxu0 0
    %584 = vmatmul.mubr.bf16.gmra.mrb[0].mxu0 %v479
    %v585 = vpop.f32.mrb[0].mxu0
    %v586 = vadd.f32 %v501, %v585
    %v587 = vpop.f32.mrb[0].mxu0
    %v588 = vpop.f32.mrb[0].mxu0
    %v589 = vadd.f32 %v501, %v588
    %v590 = vpop.f32.mrb[0].mxu0
    %591 = vdwg.mxu0
    %v592 = vxor.u32 %v586, 2147483648
    %v593 = vxor.u32 %v589, 2147483648
    %v594 = vmul.f32 %v592, 1.442695
    %v595 = vpow.pop %v594
    %v596 = vmul.f32 %v593, 1.442695
    %v597 = vpow.pop %v596
    %v598 = vadd.f32 %v595, 1.0
    %v599 = vadd.f32 %v597, 1.0
    %v600 = vrcp.pop %v598
    %v601 = vmul.f32 1.0, %v600
    %v602 = vrcp.pop %v599
    %v603 = vmul.f32 1.0, %v602
    %v604 = vmul.f32 %v586, %v601
    %v605 = vmul.f32 %v589, %v603
    %v606 = vpack.c.bf16 %v605, %v604
    %s607 = scalar_lea.vmem [#allocation8], 64
    %v608 = vld [vmem:[%s607] sm:$0xf]
    %v609 = vld [vmem:[%s607 + $0x4] sm:$0xf]
    %v610 = vld [vmem:[%s607 + $0x8] sm:$0xf]
    %v611 = vld [vmem:[%s607 + $0xc] sm:$0xf]
    %v612 = vld [vmem:[%s607 + $0x10] sm:$0xf]
    %v613 = vld [vmem:[%s607 + $0x14] sm:$0xf]
    %v614 = vld [vmem:[%s607 + $0x18] sm:$0xf]
    %v615 = vld [vmem:[%s607 + $0x1c] sm:$0xf]
    %v616 = vld [vmem:[%s607 + $0x20] sm:$0xf]
    %v617 = vld [vmem:[%s607 + $0x24] sm:$0xf]
    %v618 = vld [vmem:[%s607 + $0x28] sm:$0xf]
    %v619 = vld [vmem:[%s607 + $0x2c] sm:$0xf]
    %v620 = vld [vmem:[%s607 + $0x30] sm:$0xf]
    %v621 = vld [vmem:[%s607 + $0x34] sm:$0xf]
    %v622 = vld [vmem:[%s607 + $0x38] sm:$0xf]
    %v623 = vld [vmem:[%s607 + $0x3c] sm:$0xf]
    %v625 = vlaneseq
    %v626 = vshrl.u32 %v625, 7
    %v627 = vsub.s32 0, %v626
    %v628 = vrot.slane %v478, %v627
    %v646 = vunpack.c.l.b16 %v608
    %v647 = vunpack.c.l.b16 %v609
    %v648 = vunpack.c.l.b16 %v610
    %v649 = vunpack.c.l.b16 %v611
    %v650 = vunpack.c.l.b16 %v612
    %v651 = vunpack.c.l.b16 %v613
    %v652 = vunpack.c.l.b16 %v614
    %v653 = vunpack.c.l.b16 %v615
    %v654 = vunpack.c.l.b16 %v616
    %v655 = vunpack.c.l.b16 %v617
    %v656 = vunpack.c.l.b16 %v618
    %v657 = vunpack.c.l.b16 %v619
    %v658 = vunpack.c.l.b16 %v620
    %v659 = vunpack.c.l.b16 %v621
    %v660 = vunpack.c.l.b16 %v622
    %v661 = vunpack.c.l.b16 %v623
    %v662 = vpack.c.b16 %v647, %v646
    %v663 = vpack.c.b16 %v649, %v648
    %v664 = vpack.c.b16 %v651, %v650
    %v665 = vpack.c.b16 %v653, %v652
    %v666 = vpack.c.b16 %v655, %v654
    %v667 = vpack.c.b16 %v657, %v656
    %v668 = vpack.c.b16 %v659, %v658
    %v669 = vpack.c.b16 %v661, %v660
    %678 = vmatprep.subr.bf16.mxu0 0
    %679 = vmatpush1.bf16.msra.mxu0 %v662
    %680 = vmatprep.subr.bf16.mxu0 0
    %681 = vmatpush1.bf16.msra.mxu0 %v663
    %682 = vmatprep.subr.bf16.mxu0 0
    %683 = vmatpush1.bf16.msra.mxu0 %v664
    %684 = vmatprep.subr.bf16.mxu0 0
    %685 = vmatpush1.bf16.msra.mxu0 %v665
    %686 = vmatprep.subr.bf16.mxu0 0
    %687 = vmatpush1.bf16.msra.mxu0 %v666
    %688 = vmatprep.subr.bf16.mxu0 0
    %689 = vmatpush1.bf16.msra.mxu0 %v667
    %690 = vmatprep.subr.bf16.mxu0 0
    %691 = vmatpush1.bf16.msra.mxu0 %v668
    %692 = vmatprep.subr.bf16.mxu0 0
    %693 = vmatpush1.bf16.msra.mxu0 %v669
    %694 = vmatprep.subr.bf16.mxu0 0
    %695 = vmatpush1.bf16.msra.mxu0 0
    %696 = vmatprep.subr.bf16.mxu0 0
    %697 = vmatpush1.bf16.msra.mxu0 0
    %698 = vmatprep.subr.bf16.mxu0 0
    %699 = vmatpush1.bf16.msra.mxu0 0
    %700 = vmatprep.subr.bf16.mxu0 0
    %701 = vmatpush1.bf16.msra.mxu0 0
    %702 = vmatprep.subr.bf16.mxu0 0
    %703 = vmatpush1.bf16.msra.mxu0 0
    %704 = vmatprep.subr.bf16.mxu0 0
    %705 = vmatpush1.bf16.msra.mxu0 0
    %706 = vmatprep.subr.bf16.mxu0 0
    %707 = vmatpush1.bf16.msra.mxu0 0
    %708 = vmatprep.subr.bf16.mxu0 0
    %709 = vmatpush1.bf16.msra.mxu0 0
    %710 = vmatprep.mubr.bf16.mxu0 0
    %711 = vmatmul.mubr.bf16.gmra.mrb[0].mxu0 %v606
    %v712 = vpop.f32.mrb[0].mxu0
    %v713 = vadd.f32 %v628, %v712
    %v714 = vpop.f32.mrb[0].mxu0
    %v715 = vpop.f32.mrb[0].mxu0
    %v716 = vadd.f32 %v628, %v715
    %v717 = vpop.f32.mrb[0].mxu0
    %718 = vdwg.mxu0
    %v719 = vmul.f32 %v713, 0.3
    %v720 = vmul.f32 %v716, 0.3
    %v721 = vadd.f32 %v473, %v719
    %v722 = vadd.f32 %v474, %v720
    %s723 = scalar_lea.vmem %s4, 2
    %v724 = vld [vmem:[%s723] sm:$0x1]
    %s725 = scalar_lea.vmem %s6, 2
    %v726 = vld [vmem:[%s725] sm:$0x1]
    %v727 = vpack.c.bf16 %v722, %v721
    %s728 = scalar_lea.vmem [#allocation7], 128
    %v729 = vld [vmem:[%s728] sm:$0xf]
    %v730 = vld [vmem:[%s728 + $0x4] sm:$0xf]
    %v731 = vld [vmem:[%s728 + $0x8] sm:$0xf]
    %v732 = vld [vmem:[%s728 + $0xc] sm:$0xf]
    %v733 = vld [vmem:[%s728 + $0x10] sm:$0xf]
    %v734 = vld [vmem:[%s728 + $0x14] sm:$0xf]
    %v735 = vld [vmem:[%s728 + $0x18] sm:$0xf]
    %v736 = vld [vmem:[%s728 + $0x1c] sm:$0xf]
    %v737 = vld [vmem:[%s728 + $0x20] sm:$0xf]
    %v738 = vld [vmem:[%s728 + $0x24] sm:$0xf]
    %v739 = vld [vmem:[%s728 + $0x28] sm:$0xf]
    %v740 = vld [vmem:[%s728 + $0x2c] sm:$0xf]
    %v741 = vld [vmem:[%s728 + $0x30] sm:$0xf]
    %v742 = vld [vmem:[%s728 + $0x34] sm:$0xf]
    %v743 = vld [vmem:[%s728 + $0x38] sm:$0xf]
    %v744 = vld [vmem:[%s728 + $0x3c] sm:$0xf]
    %v746 = vlaneseq
    %v747 = vshrl.u32 %v746, 7
    %v748 = vsub.s32 0, %v747
    %v749 = vrot.slane %v724, %v748
    %v767 = vunpack.c.l.b16 %v729
    %v768 = vunpack.c.l.b16 %v730
    %v769 = vunpack.c.l.b16 %v731
    %v770 = vunpack.c.l.b16 %v732
    %v771 = vunpack.c.l.b16 %v733
    %v772 = vunpack.c.l.b16 %v734
    %v773 = vunpack.c.l.b16 %v735
    %v774 = vunpack.c.l.b16 %v736
    %v775 = vunpack.c.l.b16 %v737
    %v776 = vunpack.c.l.b16 %v738
    %v777 = vunpack.c.l.b16 %v739
    %v778 = vunpack.c.l.b16 %v740
    %v779 = vunpack.c.l.b16 %v741
    %v780 = vunpack.c.l.b16 %v742
    %v781 = vunpack.c.l.b16 %v743
    %v782 = vunpack.c.l.b16 %v744
    %v783 = vpack.c.b16 %v768, %v767
    %v784 = vpack.c.b16 %v770, %v769
    %v785 = vpack.c.b16 %v772, %v771
    %v786 = vpack.c.b16 %v774, %v773
    %v787 = vpack.c.b16 %v776, %v775
    %v788 = vpack.c.b16 %v778, %v777
    %v789 = vpack.c.b16 %v780, %v779
    %v790 = vpack.c.b16 %v782, %v781
    %799 = vmatprep.subr.bf16.mxu0 0
    %800 = vmatpush1.bf16.msra.mxu0 %v783
    %801 = vmatprep.subr.bf16.mxu0 0
    %802 = vmatpush1.bf16.msra.mxu0 %v784
    %803 = vmatprep.subr.bf16.mxu0 0
    %804 = vmatpush1.bf16.msra.mxu0 %v785
    %805 = vmatprep.subr.bf16.mxu0 0
    %806 = vmatpush1.bf16.msra.mxu0 %v786
    %807 = vmatprep.subr.bf16.mxu0 0
    %808 = vmatpush1.bf16.msra.mxu0 %v787
    %809 = vmatprep.subr.bf16.mxu0 0
    %810 = vmatpush1.bf16.msra.mxu0 %v788
    %811 = vmatprep.subr.bf16.mxu0 0
    %812 = vmatpush1.bf16.msra.mxu0 %v789
    %813 = vmatprep.subr.bf16.mxu0 0
    %814 = vmatpush1.bf16.msra.mxu0 %v790
    %815 = vmatprep.subr.bf16.mxu0 0
    %816 = vmatpush1.bf16.msra.mxu0 0
    %817 = vmatprep.subr.bf16.mxu0 0
    %818 = vmatpush1.bf16.msra.mxu0 0
    %819 = vmatprep.subr.bf16.mxu0 0
    %820 = vmatpush1.bf16.msra.mxu0 0
    %821 = vmatprep.subr.bf16.mxu0 0
    %822 = vmatpush1.bf16.msra.mxu0 0
    %823 = vmatprep.subr.bf16.mxu0 0
    %824 = vmatpush1.bf16.msra.mxu0 0
    %825 = vmatprep.subr.bf16.mxu0 0
    %826 = vmatpush1.bf16.msra.mxu0 0
    %827 = vmatprep.subr.bf16.mxu0 0
    %828 = vmatpush1.bf16.msra.mxu0 0
    %829 = vmatprep.subr.bf16.mxu0 0
    %830 = vmatpush1.bf16.msra.mxu0 0
    %831 = vmatprep.mubr.bf16.mxu0 0
    %832 = vmatmul.mubr.bf16.gmra.mrb[0].mxu0 %v727
    %v833 = vpop.f32.mrb[0].mxu0
    %v834 = vadd.f32 %v749, %v833
    %v835 = vpop.f32.mrb[0].mxu0
    %v836 = vpop.f32.mrb[0].mxu0
    %v837 = vadd.f32 %v749, %v836
    %v838 = vpop.f32.mrb[0].mxu0
    %839 = vdwg.mxu0
    %v840 = vxor.u32 %v834, 2147483648
    %v841 = vxor.u32 %v837, 2147483648
    %v842 = vmul.f32 %v840, 1.442695
    %v843 = vpow.pop %v842
    %v844 = vmul.f32 %v841, 1.442695
    %v845 = vpow.pop %v844
    %v846 = vadd.f32 %v843, 1.0
    %v847 = vadd.f32 %v845, 1.0
    %v848 = vrcp.pop %v846
    %v849 = vmul.f32 1.0, %v848
    %v850 = vrcp.pop %v847
    %v851 = vmul.f32 1.0, %v850
    %v852 = vmul.f32 %v834, %v849
    %v853 = vmul.f32 %v837, %v851
    %v854 = vpack.c.bf16 %v853, %v852
    %s855 = scalar_lea.vmem [#allocation8], 128
    %v856 = vld [vmem:[%s855] sm:$0xf]
    %v857 = vld [vmem:[%s855 + $0x4] sm:$0xf]
    %v858 = vld [vmem:[%s855 + $0x8] sm:$0xf]
    %v859 = vld [vmem:[%s855 + $0xc] sm:$0xf]
    %v860 = vld [vmem:[%s855 + $0x10] sm:$0xf]
    %v861 = vld [vmem:[%s855 + $0x14] sm:$0xf]
    %v862 = vld [vmem:[%s855 + $0x18] sm:$0xf]
    %v863 = vld [vmem:[%s855 + $0x1c] sm:$0xf]
    %v864 = vld [vmem:[%s855 + $0x20] sm:$0xf]
    %v865 = vld [vmem:[%s855 + $0x24] sm:$0xf]
    %v866 = vld [vmem:[%s855 + $0x28] sm:$0xf]
    %v867 = vld [vmem:[%s855 + $0x2c] sm:$0xf]
    %v868 = vld [vmem:[%s855 + $0x30] sm:$0xf]
    %v869 = vld [vmem:[%s855 + $0x34] sm:$0xf]
    %v870 = vld [vmem:[%s855 + $0x38] sm:$0xf]
    %v871 = vld [vmem:[%s855 + $0x3c] sm:$0xf]
    %v873 = vlaneseq
    %v874 = vshrl.u32 %v873, 7
    %v875 = vsub.s32 0, %v874
    %v876 = vrot.slane %v726, %v875
    %v894 = vunpack.c.l.b16 %v856
    %v895 = vunpack.c.l.b16 %v857
    %v896 = vunpack.c.l.b16 %v858
    %v897 = vunpack.c.l.b16 %v859
    %v898 = vunpack.c.l.b16 %v860
    %v899 = vunpack.c.l.b16 %v861
    %v900 = vunpack.c.l.b16 %v862
    %v901 = vunpack.c.l.b16 %v863
    %v902 = vunpack.c.l.b16 %v864
    %v903 = vunpack.c.l.b16 %v865
    %v904 = vunpack.c.l.b16 %v866
    %v905 = vunpack.c.l.b16 %v867
    %v906 = vunpack.c.l.b16 %v868
    %v907 = vunpack.c.l.b16 %v869
    %v908 = vunpack.c.l.b16 %v870
    %v909 = vunpack.c.l.b16 %v871
    %v910 = vpack.c.b16 %v895, %v894
    %v911 = vpack.c.b16 %v897, %v896
    %v912 = vpack.c.b16 %v899, %v898
    %v913 = vpack.c.b16 %v901, %v900
    %v914 = vpack.c.b16 %v903, %v902
    %v915 = vpack.c.b16 %v905, %v904
    %v916 = vpack.c.b16 %v907, %v906
    %v917 = vpack.c.b16 %v909, %v908
    %926 = vmatprep.subr.bf16.mxu0 0
    %927 = vmatpush1.bf16.msra.mxu0 %v910
    %928 = vmatprep.subr.bf16.mxu0 0
    %929 = vmatpush1.bf16.msra.mxu0 %v911
    %930 = vmatprep.subr.bf16.mxu0 0
    %931 = vmatpush1.bf16.msra.mxu0 %v912
    %932 = vmatprep.subr.bf16.mxu0 0
    %933 = vmatpush1.bf16.msra.mxu0 %v913
    %934 = vmatprep.subr.bf16.mxu0 0
    %935 = vmatpush1.bf16.msra.mxu0 %v914
    %936 = vmatprep.subr.bf16.mxu0 0
    %937 = vmatpush1.bf16.msra.mxu0 %v915
    %938 = vmatprep.subr.bf16.mxu0 0
    %939 = vmatpush1.bf16.msra.mxu0 %v916
    %940 = vmatprep.subr.bf16.mxu0 0
    %941 = vmatpush1.bf16.msra.mxu0 %v917
    %942 = vmatprep.subr.bf16.mxu0 0
    %943 = vmatpush1.bf16.msra.mxu0 0
    %944 = vmatprep.subr.bf16.mxu0 0
    %945 = vmatpush1.bf16.msra.mxu0 0
    %946 = vmatprep.subr.bf16.mxu0 0
    %947 = vmatpush1.bf16.msra.mxu0 0
    %948 = vmatprep.subr.bf16.mxu0 0
    %949 = vmatpush1.bf16.msra.mxu0 0
    %950 = vmatprep.subr.bf16.mxu0 0
    %951 = vmatpush1.bf16.msra.mxu0 0
    %952 = vmatprep.subr.bf16.mxu0 0
    %953 = vmatpush1.bf16.msra.mxu0 0
    %954 = vmatprep.subr.bf16.mxu0 0
    %955 = vmatpush1.bf16.msra.mxu0 0
    %956 = vmatprep.subr.bf16.mxu0 0
    %957 = vmatpush1.bf16.msra.mxu0 0
    %958 = vmatprep.mubr.bf16.mxu0 0
    %959 = vmatmul.mubr.bf16.gmra.mrb[0].mxu0 %v854
    %v960 = vpop.f32.mrb[0].mxu0
    %v961 = vadd.f32 %v876, %v960
    %v962 = vpop.f32.mrb[0].mxu0
    %v963 = vpop.f32.mrb[0].mxu0
    %v964 = vadd.f32 %v876, %v963
    %v965 = vpop.f32.mrb[0].mxu0
    %966 = vdwg.mxu0
    %v967 = vmul.f32 %v961, 0.3
    %v968 = vmul.f32 %v964, 0.3
    %v969 = vadd.f32 %v721, %v967
    %v970 = vadd.f32 %v722, %v968
    %v971 = vpack.c.bf16 %v970, %v969
    %v972 = vld [vmem:[#allocation10] sm:$0xf]
    %v973 = vld [vmem:[#allocation10 + $0x4] sm:$0xf]
    %v974 = vld [vmem:[#allocation10 + $0x8] sm:$0xf]
    %v975 = vld [vmem:[#allocation10 + $0xc] sm:$0xf]
    %v976 = vld [vmem:[#allocation10 + $0x10] sm:$0xf]
    %v977 = vld [vmem:[#allocation10 + $0x14] sm:$0xf]
    %v978 = vld [vmem:[#allocation10 + $0x18] sm:$0xf]
    %v979 = vld [vmem:[#allocation10 + $0x1c] sm:$0xf]
    %v980 = vld [vmem:[#allocation10 + $0x20] sm:$0xf]
    %v981 = vld [vmem:[#allocation10 + $0x24] sm:$0xf]
    %v982 = vld [vmem:[#allocation10 + $0x28] sm:$0xf]
    %v983 = vld [vmem:[#allocation10 + $0x2c] sm:$0xf]
    %v984 = vld [vmem:[#allocation10 + $0x30] sm:$0xf]
    %v985 = vld [vmem:[#allocation10 + $0x34] sm:$0xf]
    %v986 = vld [vmem:[#allocation10 + $0x38] sm:$0xf]
    %v987 = vld [vmem:[#allocation10 + $0x3c] sm:$0xf]
    %v988 = vld [vmem:[%s8] sm:$0x1]
    %v990 = vlaneseq
    %v991 = vshrl.u32 %v990, 7
    %v992 = vsub.s32 0, %v991
    %v993 = vrot.slane %v988, %v992
    %v1011 = vunpack.c.l.b16 %v972
    %v1012 = vunpack.c.l.b16 %v973
    %v1013 = vunpack.c.l.b16 %v974
    %v1014 = vunpack.c.l.b16 %v975
    %v1015 = vunpack.c.l.b16 %v976
    %v1016 = vunpack.c.l.b16 %v977
    %v1017 = vunpack.c.l.b16 %v978
    %v1018 = vunpack.c.l.b16 %v979
    %v1019 = vunpack.c.l.b16 %v980
    %v1020 = vunpack.c.l.b16 %v981
    %v1021 = vunpack.c.l.b16 %v982
    %v1022 = vunpack.c.l.b16 %v983
    %v1023 = vunpack.c.l.b16 %v984
    %v1024 = vunpack.c.l.b16 %v985
    %v1025 = vunpack.c.l.b16 %v986
    %v1026 = vunpack.c.l.b16 %v987
    %v1027 = vpack.c.b16 %v1012, %v1011
    %v1028 = vpack.c.b16 %v1014, %v1013
    %v1029 = vpack.c.b16 %v1016, %v1015
    %v1030 = vpack.c.b16 %v1018, %v1017
    %v1031 = vpack.c.b16 %v1020, %v1019
    %v1032 = vpack.c.b16 %v1022, %v1021
    %v1033 = vpack.c.b16 %v1024, %v1023
    %v1034 = vpack.c.b16 %v1026, %v1025
    %1043 = vmatprep.subr.bf16.mxu0 0
    %1044 = vmatpush1.bf16.msra.mxu0 %v1027
    %1045 = vmatprep.subr.bf16.mxu0 0
    %1046 = vmatpush1.bf16.msra.mxu0 %v1028
    %1047 = vmatprep.subr.bf16.mxu0 0
    %1048 = vmatpush1.bf16.msra.mxu0 %v1029
    %1049 = vmatprep.subr.bf16.mxu0 0
    %1050 = vmatpush1.bf16.msra.mxu0 %v1030
    %1051 = vmatprep.subr.bf16.mxu0 0
    %1052 = vmatpush1.bf16.msra.mxu0 %v1031
    %1053 = vmatprep.subr.bf16.mxu0 0
    %1054 = vmatpush1.bf16.msra.mxu0 %v1032
    %1055 = vmatprep.subr.bf16.mxu0 0
    %1056 = vmatpush1.bf16.msra.mxu0 %v1033
    %1057 = vmatprep.subr.bf16.mxu0 0
    %1058 = vmatpush1.bf16.msra.mxu0 %v1034
    %1059 = vmatprep.subr.bf16.mxu0 0
    %1060 = vmatpush1.bf16.msra.mxu0 0
    %1061 = vmatprep.subr.bf16.mxu0 0
    %1062 = vmatpush1.bf16.msra.mxu0 0
    %1063 = vmatprep.subr.bf16.mxu0 0
    %1064 = vmatpush1.bf16.msra.mxu0 0
    %1065 = vmatprep.subr.bf16.mxu0 0
    %1066 = vmatpush1.bf16.msra.mxu0 0
    %1067 = vmatprep.subr.bf16.mxu0 0
    %1068 = vmatpush1.bf16.msra.mxu0 0
    %1069 = vmatprep.subr.bf16.mxu0 0
    %1070 = vmatpush1.bf16.msra.mxu0 0
    %1071 = vmatprep.subr.bf16.mxu0 0
    %1072 = vmatpush1.bf16.msra.mxu0 0
    %1073 = vmatprep.subr.bf16.mxu0 0
    %1074 = vmatpush1.bf16.msra.mxu0 0
    %1075 = vmatprep.mubr.bf16.mxu0 0
    %1076 = vmatmul.mubr.bf16.gmra.mrb[0].mxu0 %v971
    %v1077 = vpop.f32.mrb[0].mxu0
    %v1078 = vadd.f32 %v993, %v1077
    %v1079 = vpop.f32.mrb[0].mxu0
    %v1080 = vpop.f32.mrb[0].mxu0
    %v1081 = vadd.f32 %v993, %v1080
    %v1082 = vpop.f32.mrb[0].mxu0
    %1083 = vdwg.mxu0
    %1084 = vst [vmem:[#allocation11] sm:$0xff] %v1078
    %1085 = vst [vmem:[#allocation11 + $0x8] sm:$0xff] %v1081
    // Predicated region
    $region58: #{tpu_custom_call.1} parent=1 // pred_check
      _
    $region59: #{tpu_custom_call.1} parent=1 // pred_check_branch
      %1087 = sbr.rel (0) target = $region61
    $region60: #{tpu_custom_call.1} parent=1 // pred_region
      %s1089 = ssub.s32 256, 256
      %1090 = vsyncadd [#allocation4], %s1089
      %s1091 = sshll.u32 [#allocation11], 4
      %s1092 = int_to_ptr.vmem [resolvable:$true] %s1091
      %1097 = dma.vmem_to_hbm [thread:$0]  %s1092, 256, %s9, [#allocation4], 128, 128, 8
    $region61: #{tpu_custom_call.1} parent=1 // pred_fallthru
      _
    // Predicated region
    $region62: #{tpu_custom_call.1} parent=1 // pred_check
      _
    $region63: #{tpu_custom_call.1} parent=1 // pred_check_branch
      %1099 = sbr.rel (0) target = $region65
    $region64: #{tpu_custom_call.1} parent=1 // pred_region
      %1100 = dma.done [#allocation4], 256
    $region65: #{tpu_custom_call.1} parent=1 // pred_fallthru
      _
    %1101 = vsyncpa [#allocation3], 1
    %1102 = vsyncpa [#allocation6], 1
    %1103 = vsyncpa [#allocation9], 1
    %1104 = vsyncpa [#allocation4], 1

// kernel: tpu_custom_call.1
$region0: #{tpu_custom_call.1}
  #allocation0 [shape = 'u32[]', space=smem, size = 0x4, offset = 0x4, fixed_abs, tag = 'smem constant byte address 0x4 - core index']
  #allocation1 [shape = 'u32[144,128]{1,0:T(1,128)}', space=vmem, size = 0x12000, scoped, tag = 'internal scratch']
  %s0 = inlined_call_operand.hbm [shape: f32[16,128], index: 0, kind: input, shape index: {}]
  %s1 = inlined_call_operand.hbm [shape: bf16[128,128], index: 1, kind: input, shape index: {}]
  %s2 = inlined_call_operand.vmem [shape: f32[1,128], index: 2, kind: input, shape index: {}]
  %s3 = inlined_call_operand.hbm [shape: bf16[3,128,128], index: 3, kind: input, shape index: {}]
  %s4 = inlined_call_operand.vmem [shape: f32[3,1,128], index: 4, kind: input, shape index: {}]
  %s5 = inlined_call_operand.hbm [shape: bf16[3,128,128], index: 5, kind: input, shape index: {}]
  %s6 = inlined_call_operand.vmem [shape: f32[3,1,128], index: 6, kind: input, shape index: {}]
  %s7 = inlined_call_operand.hbm [shape: bf16[128,128], index: 7, kind: input, shape index: {}]
  %s8 = inlined_call_operand.vmem [shape: f32[1,128], index: 8, kind: input, shape index: {}]
  %s9 = inlined_call_operand.hbm [shape: f32[16,128], index: 9, kind: output, shape index: {}]
  %s10 = sld [smem:[#allocation0]]
  $region66: #{tpu_custom_call.1} parent=0
    _
  %s12 = ssub.s32 1, %s10
  %s13 = scalar_select 0, %s12, %s10
  $region1: #{tpu_custom_call.1} parent=0
    #allocation2 [shape = 'u8[8192]{0}', space=vmem, size = 0x2000, scoped, tag = 'input window, operand 0, single buffered']
    #allocation3 [shape = 's32[1]{0}', space=sflag, size = 0x4, scoped, tag = 'scoped memory for tpu_custom_call.1']
    #allocation4 [shape = 's32[1]{0}', space=sflag, size = 0x4, scoped, tag = 'scoped memory for tpu_custom_call.1']
    #allocation5 [shape = 'u8[32768]{0}', space=vmem, size = 0x8000, scoped, tag = 'input window, operand 1, single buffered']
    #allocation6 [shape = 's32[1]{0}', space=sflag, size = 0x4, scoped, tag = 'scoped memory for tpu_custom_call.1']
    #allocation7 [shape = 'u8[98304]{0}', space=vmem, size = 0x18000, scoped, tag = 'input window, operand 3, single buffered']
    #allocation8 [shape = 'u8[98304]{0}', space=vmem, size = 0x18000, scoped, tag = 'input window, operand 5, single buffered']
    #allocation9 [shape = 's32[1]{0}', space=sflag, size = 0x4, scoped, tag = 'scoped memory for tpu_custom_call.1']
    #allocation10 [shape = 'u8[32768]{0}', space=vmem, size = 0x8000, scoped, tag = 'input window, operand 7, single buffered']
    #allocation11 [shape = 'u8[8192]{0}', space=vmem, size = 0x2000, scoped, tag = 'output window, operand 0, single buffered']
    %14 = vsyncpa [#allocation3], 0
    %15 = vsyncpa [#allocation6], 0
    %16 = vsyncpa [#allocation9], 0
    %17 = vsyncpa [#allocation4], 0
    // Predicated region
    $region2: #{tpu_custom_call.1} parent=1 // pred_check
      _
    $region3: #{tpu_custom_call.1} parent=1 // pred_check_branch
      %19 = sbr.rel (0) target = $region5
    $region4: #{tpu_custom_call.1} parent=1 // pred_region
      %s21 = ssub.s32 256, 256
      %22 = vsyncadd [#allocation3], %s21
      %s23 = sshll.u32 [#allocation2], 4
      %s24 = int_to_ptr.vmem [resolvable:$true] %s23
      %29 = dma.hbm_to_vmem [thread:$0]  %s0, 256, %s24, [#allocation3], 128, 128, 8
    $region5: #{tpu_custom_call.1} parent=1 // pred_fallthru
      _
    // Predicated region
    $region6: #{tpu_custom_call.1} parent=1 // pred_check
      _
    $region7: #{tpu_custom_call.1} parent=1 // pred_check_branch
      %31 = sbr.rel (0) target = $region9
    $region8: #{tpu_custom_call.1} parent=1 // pred_region
      %s33 = ssub.s32 1024, 1024
      %34 = vsyncadd [#allocation6], %s33
      %s35 = sshll.u32 [#allocation5], 4
      %s36 = int_to_ptr.vmem [resolvable:$true] %s35
      %41 = dma.hbm_to_vmem [thread:$0]  %s1, 1024, %s36, [#allocation6], 64, 64, 4
    $region9: #{tpu_custom_call.1} parent=1 // pred_fallthru
      _
    // Predicated region
    $region10: #{tpu_custom_call.1} parent=1 // pred_check
      _
    $region11: #{tpu_custom_call.1} parent=1 // pred_check_branch
      %43 = sbr.rel (0) target = $region13
    $region12: #{tpu_custom_call.1} parent=1 // pred_region
      _
    $region13: #{tpu_custom_call.1} parent=1 // pred_fallthru
      _
    // Predicated region
    $region14: #{tpu_custom_call.1} parent=1 // pred_check
      _
    $region15: #{tpu_custom_call.1} parent=1 // pred_check_branch
      %45 = sbr.rel (0) target = $region17
    $region16: #{tpu_custom_call.1} parent=1 // pred_region
      %s47 = ssub.s32 3072, 3072
      %48 = vsyncadd [#allocation6], %s47
      %s49 = sshll.u32 [#allocation7], 4
      %s50 = int_to_ptr.vmem [resolvable:$true] %s49
      %55 = dma.hbm_to_vmem [thread:$0]  %s3, 3072, %s50, [#allocation6], 64, 64, 4
    $region17: #{tpu_custom_call.1} parent=1 // pred_fallthru
      _
    // Predicated region
    $region18: #{tpu_custom_call.1} parent=1 // pred_check
      _
    $region19: #{tpu_custom_call.1} parent=1 // pred_check_branch
      %57 = sbr.rel (0) target = $region21
    $region20: #{tpu_custom_call.1} parent=1 // pred_region
      _
    $region21: #{tpu_custom_call.1} parent=1 // pred_fallthru
      _
    // Predicated region
    $region22: #{tpu_custom_call.1} parent=1 // pred_check
      _
    $region23: #{tpu_custom_call.1} parent=1 // pred_check_branch
      %59 = sbr.rel (0) target = $region25
    $region24: #{tpu_custom_call.1} parent=1 // pred_region
      %s61 = ssub.s32 3072, 3072
      %62 = vsyncadd [#allocation9], %s61
      %s63 = sshll.u32 [#allocation8], 4
      %s64 = int_to_ptr.vmem [resolvable:$true] %s63
      %69 = dma.hbm_to_vmem [thread:$0]  %s5, 3072, %s64, [#allocation9], 64, 64, 4
    $region25: #{tpu_custom_call.1} parent=1 // pred_fallthru
      _
    // Predicated region
    $region26: #{tpu_custom_call.1} parent=1 // pred_check
      _
    $region27: #{tpu_custom_call.1} parent=1 // pred_check_branch
      %71 = sbr.rel (0) target = $region29
    $region28: #{tpu_custom_call.1} parent=1 // pred_region
      _
    $region29: #{tpu_custom_call.1} parent=1 // pred_fallthru
      _
    // Predicated region
    $region30: #{tpu_custom_call.1} parent=1 // pred_check
      _
    $region31: #{tpu_custom_call.1} parent=1 // pred_check_branch
      %73 = sbr.rel (0) target = $region33
    $region32: #{tpu_custom_call.1} parent=1 // pred_region
      %s75 = ssub.s32 1024, 1024
      %76 = vsyncadd [#allocation9], %s75
      %s77 = sshll.u32 [#allocation10], 4
      %s78 = int_to_ptr.vmem [resolvable:$true] %s77
      %83 = dma.hbm_to_vmem [thread:$0]  %s7, 1024, %s78, [#allocation9], 64, 64, 4
    $region33: #{tpu_custom_call.1} parent=1 // pred_fallthru
      _
    // Predicated region
    $region34: #{tpu_custom_call.1} parent=1 // pred_check
      _
    $region35: #{tpu_custom_call.1} parent=1 // pred_check_branch
      %85 = sbr.rel (0) target = $region37
    $region36: #{tpu_custom_call.1} parent=1 // pred_region
      _
    $region37: #{tpu_custom_call.1} parent=1 // pred_fallthru
      _
    // Predicated region
    $region38: #{tpu_custom_call.1} parent=1 // pred_check
      _
    $region39: #{tpu_custom_call.1} parent=1 // pred_check_branch
      %87 = sbr.rel (0) target = $region41
    $region40: #{tpu_custom_call.1} parent=1 // pred_region
      %88 = dma.done [#allocation3], 256
    $region41: #{tpu_custom_call.1} parent=1 // pred_fallthru
      _
    // Predicated region
    $region42: #{tpu_custom_call.1} parent=1 // pred_check
      _
    $region43: #{tpu_custom_call.1} parent=1 // pred_check_branch
      %90 = sbr.rel (0) target = $region45
    $region44: #{tpu_custom_call.1} parent=1 // pred_region
      %91 = dma.done [#allocation6], 1024
    $region45: #{tpu_custom_call.1} parent=1 // pred_fallthru
      _
    // Predicated region
    $region46: #{tpu_custom_call.1} parent=1 // pred_check
      _
    $region47: #{tpu_custom_call.1} parent=1 // pred_check_branch
      %93 = sbr.rel (0) target = $region49
    $region48: #{tpu_custom_call.1} parent=1 // pred_region
      %94 = dma.done [#allocation6], 3072
    $region49: #{tpu_custom_call.1} parent=1 // pred_fallthru
      _
    // Predicated region
    $region50: #{tpu_custom_call.1} parent=1 // pred_check
      _
    $region51: #{tpu_custom_call.1} parent=1 // pred_check_branch
      %96 = sbr.rel (0) target = $region53
    $region52: #{tpu_custom_call.1} parent=1 // pred_region
      %97 = dma.done [#allocation9], 3072
    $region53: #{tpu_custom_call.1} parent=1 // pred_fallthru
      _
    // Predicated region
    $region54: #{tpu_custom_call.1} parent=1 // pred_check
      _
    $region55: #{tpu_custom_call.1} parent=1 // pred_check_branch
      %99 = sbr.rel (0) target = $region57
    $region56: #{tpu_custom_call.1} parent=1 // pred_region
      %100 = dma.done [#allocation9], 1024
    $region57: #{tpu_custom_call.1} parent=1 // pred_fallthru
      _
    %v102 = vld [vmem:[#allocation2] sm:$0xff]
    %v103 = vld [vmem:[#allocation2 + $0x8] sm:$0xff]
    %v104 = vpack.c.bf16 %v103, %v102
    %v105 = vld [vmem:[#allocation5] sm:$0xf]
    %v106 = vld [vmem:[#allocation5 + $0x4] sm:$0xf]
    %v107 = vld [vmem:[#allocation5 + $0x8] sm:$0xf]
    %v108 = vld [vmem:[#allocation5 + $0xc] sm:$0xf]
    %v109 = vld [vmem:[#allocation5 + $0x10] sm:$0xf]
    %v110 = vld [vmem:[#allocation5 + $0x14] sm:$0xf]
    %v111 = vld [vmem:[#allocation5 + $0x18] sm:$0xf]
    %v112 = vld [vmem:[#allocation5 + $0x1c] sm:$0xf]
    %v113 = vld [vmem:[#allocation5 + $0x20] sm:$0xf]
    %v114 = vld [vmem:[#allocation5 + $0x24] sm:$0xf]
    %v115 = vld [vmem:[#allocation5 + $0x28] sm:$0xf]
    %v116 = vld [vmem:[#allocation5 + $0x2c] sm:$0xf]
    %v117 = vld [vmem:[#allocation5 + $0x30] sm:$0xf]
    %v118 = vld [vmem:[#allocation5 + $0x34] sm:$0xf]
    %v119 = vld [vmem:[#allocation5 + $0x38] sm:$0xf]
    %v120 = vld [vmem:[#allocation5 + $0x3c] sm:$0xf]
    %v121 = vld [vmem:[%s2] sm:$0x1]
    %v123 = vlaneseq
    %v124 = vshrl.u32 %v123, 7
    %v125 = vsub.s32 0, %v124
    %v126 = vrot.slane %v121, %v125
    %v144 = vunpack.c.l.b16 %v105
    %v145 = vunpack.c.l.b16 %v106
    %v146 = vunpack.c.l.b16 %v107
    %v147 = vunpack.c.l.b16 %v108
    %v148 = vunpack.c.l.b16 %v109
    %v149 = vunpack.c.l.b16 %v110
    %v150 = vunpack.c.l.b16 %v111
    %v151 = vunpack.c.l.b16 %v112
    %v152 = vunpack.c.l.b16 %v113
    %v153 = vunpack.c.l.b16 %v114
    %v154 = vunpack.c.l.b16 %v115
    %v155 = vunpack.c.l.b16 %v116
    %v156 = vunpack.c.l.b16 %v117
    %v157 = vunpack.c.l.b16 %v118
    %v158 = vunpack.c.l.b16 %v119
    %v159 = vunpack.c.l.b16 %v120
    %v160 = vpack.c.b16 %v145, %v144
    %v161 = vpack.c.b16 %v147, %v146
    %v162 = vpack.c.b16 %v149, %v148
    %v163 = vpack.c.b16 %v151, %v150
    %v164 = vpack.c.b16 %v153, %v152
    %v165 = vpack.c.b16 %v155, %v154
    %v166 = vpack.c.b16 %v157, %v156
    %v167 = vpack.c.b16 %v159, %v158
    %176 = vmatprep.subr.bf16.mxu0 0
    %177 = vmatpush1.bf16.msra.mxu0 %v160
    %178 = vmatprep.subr.bf16.mxu0 0
    %179 = vmatpush1.bf16.msra.mxu0 %v161
    %180 = vmatprep.subr.bf16.mxu0 0
    %181 = vmatpush1.bf16.msra.mxu0 %v162
    %182 = vmatprep.subr.bf16.mxu0 0
    %183 = vmatpush1.bf16.msra.mxu0 %v163
    %184 = vmatprep.subr.bf16.mxu0 0
    %185 = vmatpush1.bf16.msra.mxu0 %v164
    %186 = vmatprep.subr.bf16.mxu0 0
    %187 = vmatpush1.bf16.msra.mxu0 %v165
    %188 = vmatprep.subr.bf16.mxu0 0
    %189 = vmatpush1.bf16.msra.mxu0 %v166
    %190 = vmatprep.subr.bf16.mxu0 0
    %191 = vmatpush1.bf16.msra.mxu0 %v167
    %192 = vmatprep.subr.bf16.mxu0 0
    %193 = vmatpush1.bf16.msra.mxu0 0
    %194 = vmatprep.subr.bf16.mxu0 0
    %195 = vmatpush1.bf16.msra.mxu0 0
    %196 = vmatprep.subr.bf16.mxu0 0
    %197 = vmatpush1.bf16.msra.mxu0 0
    %198 = vmatprep.subr.bf16.mxu0 0
    %199 = vmatpush1.bf16.msra.mxu0 0
    %200 = vmatprep.subr.bf16.mxu0 0
    %201 = vmatpush1.bf16.msra.mxu0 0
    %202 = vmatprep.subr.bf16.mxu0 0
    %203 = vmatpush1.bf16.msra.mxu0 0
    %204 = vmatprep.subr.bf16.mxu0 0
    %205 = vmatpush1.bf16.msra.mxu0 0
    %206 = vmatprep.subr.bf16.mxu0 0
    %207 = vmatpush1.bf16.msra.mxu0 0
    %208 = vmatprep.mubr.bf16.mxu0 0
    %209 = vmatmul.mubr.bf16.gmra.mrb[0].mxu0 %v104
    %v210 = vpop.f32.mrb[0].mxu0
    %v211 = vadd.f32 %v126, %v210
    %v212 = vpop.f32.mrb[0].mxu0
    %v213 = vpop.f32.mrb[0].mxu0
    %v214 = vadd.f32 %v126, %v213
    %v215 = vpop.f32.mrb[0].mxu0
    %216 = vdwg.mxu0
    %v217 = vxor.u32 %v211, 2147483648
    %v218 = vxor.u32 %v214, 2147483648
    %v219 = vmul.f32 %v217, 1.442695
    %v220 = vpow.pop %v219
    %v221 = vmul.f32 %v218, 1.442695
    %v222 = vpow.pop %v221
    %v223 = vadd.f32 %v220, 1.0
    %v224 = vadd.f32 %v222, 1.0
    %v225 = vrcp.pop %v223
    %v226 = vmul.f32 1.0, %v225
    %v227 = vrcp.pop %v224
    %v228 = vmul.f32 1.0, %v227
    %v229 = vmul.f32 %v211, %v226
    %v230 = vmul.f32 %v214, %v228
    %v231 = vld [vmem:[%s4] sm:$0x1]
    %v232 = vld [vmem:[%s6] sm:$0x1]
    %v233 = vpack.c.bf16 %v230, %v229
    %v234 = vld [vmem:[#allocation7] sm:$0xf]
    %v235 = vld [vmem:[#allocation7 + $0x4] sm:$0xf]
    %v236 = vld [vmem:[#allocation7 + $0x8] sm:$0xf]
    %v237 = vld [vmem:[#allocation7 + $0xc] sm:$0xf]
    %v238 = vld [vmem:[#allocation7 + $0x10] sm:$0xf]
    %v239 = vld [vmem:[#allocation7 + $0x14] sm:$0xf]
    %v240 = vld [vmem:[#allocation7 + $0x18] sm:$0xf]
    %v241 = vld [vmem:[#allocation7 + $0x1c] sm:$0xf]
    %v242 = vld [vmem:[#allocation7 + $0x20] sm:$0xf]
    %v243 = vld [vmem:[#allocation7 + $0x24] sm:$0xf]
    %v244 = vld [vmem:[#allocation7 + $0x28] sm:$0xf]
    %v245 = vld [vmem:[#allocation7 + $0x2c] sm:$0xf]
    %v246 = vld [vmem:[#allocation7 + $0x30] sm:$0xf]
    %v247 = vld [vmem:[#allocation7 + $0x34] sm:$0xf]
    %v248 = vld [vmem:[#allocation7 + $0x38] sm:$0xf]
    %v249 = vld [vmem:[#allocation7 + $0x3c] sm:$0xf]
    %v251 = vlaneseq
    %v252 = vshrl.u32 %v251, 7
    %v253 = vsub.s32 0, %v252
    %v254 = vrot.slane %v231, %v253
    %v272 = vunpack.c.l.b16 %v234
    %v273 = vunpack.c.l.b16 %v235
    %v274 = vunpack.c.l.b16 %v236
    %v275 = vunpack.c.l.b16 %v237
    %v276 = vunpack.c.l.b16 %v238
    %v277 = vunpack.c.l.b16 %v239
    %v278 = vunpack.c.l.b16 %v240
    %v279 = vunpack.c.l.b16 %v241
    %v280 = vunpack.c.l.b16 %v242
    %v281 = vunpack.c.l.b16 %v243
    %v282 = vunpack.c.l.b16 %v244
    %v283 = vunpack.c.l.b16 %v245
    %v284 = vunpack.c.l.b16 %v246
    %v285 = vunpack.c.l.b16 %v247
    %v286 = vunpack.c.l.b16 %v248
    %v287 = vunpack.c.l.b16 %v249
    %v288 = vpack.c.b16 %v273, %v272
    %v289 = vpack.c.b16 %v275, %v274
    %v290 = vpack.c.b16 %v277, %v276
    %v291 = vpack.c.b16 %v279, %v278
    %v292 = vpack.c.b16 %v281, %v280
    %v293 = vpack.c.b16 %v283, %v282
    %v294 = vpack.c.b16 %v285, %v284
    %v295 = vpack.c.b16 %v287, %v286
    %304 = vmatprep.subr.bf16.mxu0 0
    %305 = vmatpush1.bf16.msra.mxu0 %v288
    %306 = vmatprep.subr.bf16.mxu0 0
    %307 = vmatpush1.bf16.msra.mxu0 %v289
    %308 = vmatprep.subr.bf16.mxu0 0
    %309 = vmatpush1.bf16.msra.mxu0 %v290
    %310 = vmatprep.subr.bf16.mxu0 0
    %311 = vmatpush1.bf16.msra.mxu0 %v291
    %312 = vmatprep.subr.bf16.mxu0 0
    %313 = vmatpush1.bf16.msra.mxu0 %v292
    %314 = vmatprep.subr.bf16.mxu0 0
    %315 = vmatpush1.bf16.msra.mxu0 %v293
    %316 = vmatprep.subr.bf16.mxu0 0
    %317 = vmatpush1.bf16.msra.mxu0 %v294
    %318 = vmatprep.subr.bf16.mxu0 0
    %319 = vmatpush1.bf16.msra.mxu0 %v295
    %320 = vmatprep.subr.bf16.mxu0 0
    %321 = vmatpush1.bf16.msra.mxu0 0
    %322 = vmatprep.subr.bf16.mxu0 0
    %323 = vmatpush1.bf16.msra.mxu0 0
    %324 = vmatprep.subr.bf16.mxu0 0
    %325 = vmatpush1.bf16.msra.mxu0 0
    %326 = vmatprep.subr.bf16.mxu0 0
    %327 = vmatpush1.bf16.msra.mxu0 0
    %328 = vmatprep.subr.bf16.mxu0 0
    %329 = vmatpush1.bf16.msra.mxu0 0
    %330 = vmatprep.subr.bf16.mxu0 0
    %331 = vmatpush1.bf16.msra.mxu0 0
    %332 = vmatprep.subr.bf16.mxu0 0
    %333 = vmatpush1.bf16.msra.mxu0 0
    %334 = vmatprep.subr.bf16.mxu0 0
    %335 = vmatpush1.bf16.msra.mxu0 0
    %336 = vmatprep.mubr.bf16.mxu0 0
    %337 = vmatmul.mubr.bf16.gmra.mrb[0].mxu0 %v233
    %v338 = vpop.f32.mrb[0].mxu0
    %v339 = vadd.f32 %v254, %v338
    %v340 = vpop.f32.mrb[0].mxu0
    %v341 = vpop.f32.mrb[0].mxu0
    %v342 = vadd.f32 %v254, %v341
    %v343 = vpop.f32.mrb[0].mxu0
    %344 = vdwg.mxu0
    %v345 = vxor.u32 %v339, 2147483648
    %v346 = vxor.u32 %v342, 2147483648
    %v347 = vmul.f32 %v345, 1.442695
    %v348 = vpow.pop %v347
    %v349 = vmul.f32 %v346, 1.442695
    %v350 = vpow.pop %v349
    %v351 = vadd.f32 %v348, 1.0
    %v352 = vadd.f32 %v350, 1.0
    %v353 = vrcp.pop %v351
    %v354 = vmul.f32 1.0, %v353
    %v355 = vrcp.pop %v352
    %v356 = vmul.f32 1.0, %v355
    %v357 = vmul.f32 %v339, %v354
    %v358 = vmul.f32 %v342, %v356
    %v359 = vpack.c.bf16 %v358, %v357
    %v360 = vld [vmem:[#allocation8] sm:$0xf]
    %v361 = vld [vmem:[#allocation8 + $0x4] sm:$0xf]
    %v362 = vld [vmem:[#allocation8 + $0x8] sm:$0xf]
    %v363 = vld [vmem:[#allocation8 + $0xc] sm:$0xf]
    %v364 = vld [vmem:[#allocation8 + $0x10] sm:$0xf]
    %v365 = vld [vmem:[#allocation8 + $0x14] sm:$0xf]
    %v366 = vld [vmem:[#allocation8 + $0x18] sm:$0xf]
    %v367 = vld [vmem:[#allocation8 + $0x1c] sm:$0xf]
    %v368 = vld [vmem:[#allocation8 + $0x20] sm:$0xf]
    %v369 = vld [vmem:[#allocation8 + $0x24] sm:$0xf]
    %v370 = vld [vmem:[#allocation8 + $0x28] sm:$0xf]
    %v371 = vld [vmem:[#allocation8 + $0x2c] sm:$0xf]
    %v372 = vld [vmem:[#allocation8 + $0x30] sm:$0xf]
    %v373 = vld [vmem:[#allocation8 + $0x34] sm:$0xf]
    %v374 = vld [vmem:[#allocation8 + $0x38] sm:$0xf]
    %v375 = vld [vmem:[#allocation8 + $0x3c] sm:$0xf]
    %v377 = vlaneseq
    %v378 = vshrl.u32 %v377, 7
    %v379 = vsub.s32 0, %v378
    %v380 = vrot.slane %v232, %v379
    %v398 = vunpack.c.l.b16 %v360
    %v399 = vunpack.c.l.b16 %v361
    %v400 = vunpack.c.l.b16 %v362
    %v401 = vunpack.c.l.b16 %v363
    %v402 = vunpack.c.l.b16 %v364
    %v403 = vunpack.c.l.b16 %v365
    %v404 = vunpack.c.l.b16 %v366
    %v405 = vunpack.c.l.b16 %v367
    %v406 = vunpack.c.l.b16 %v368
    %v407 = vunpack.c.l.b16 %v369
    %v408 = vunpack.c.l.b16 %v370
    %v409 = vunpack.c.l.b16 %v371
    %v410 = vunpack.c.l.b16 %v372
    %v411 = vunpack.c.l.b16 %v373
    %v412 = vunpack.c.l.b16 %v374
    %v413 = vunpack.c.l.b16 %v375
    %v414 = vpack.c.b16 %v399, %v398
    %v415 = vpack.c.b16 %v401, %v400
    %v416 = vpack.c.b16 %v403, %v402
    %v417 = vpack.c.b16 %v405, %v404
    %v418 = vpack.c.b16 %v407, %v406
    %v419 = vpack.c.b16 %v409, %v408
    %v420 = vpack.c.b16 %v411, %v410
    %v421 = vpack.c.b16 %v413, %v412
    %430 = vmatprep.subr.bf16.mxu0 0
    %431 = vmatpush1.bf16.msra.mxu0 %v414
    %432 = vmatprep.subr.bf16.mxu0 0
    %433 = vmatpush1.bf16.msra.mxu0 %v415
    %434 = vmatprep.subr.bf16.mxu0 0
    %435 = vmatpush1.bf16.msra.mxu0 %v416
    %436 = vmatprep.subr.bf16.mxu0 0
    %437 = vmatpush1.bf16.msra.mxu0 %v417
    %438 = vmatprep.subr.bf16.mxu0 0
    %439 = vmatpush1.bf16.msra.mxu0 %v418
    %440 = vmatprep.subr.bf16.mxu0 0
    %441 = vmatpush1.bf16.msra.mxu0 %v419
    %442 = vmatprep.subr.bf16.mxu0 0
    %443 = vmatpush1.bf16.msra.mxu0 %v420
    %444 = vmatprep.subr.bf16.mxu0 0
    %445 = vmatpush1.bf16.msra.mxu0 %v421
    %446 = vmatprep.subr.bf16.mxu0 0
    %447 = vmatpush1.bf16.msra.mxu0 0
    %448 = vmatprep.subr.bf16.mxu0 0
    %449 = vmatpush1.bf16.msra.mxu0 0
    %450 = vmatprep.subr.bf16.mxu0 0
    %451 = vmatpush1.bf16.msra.mxu0 0
    %452 = vmatprep.subr.bf16.mxu0 0
    %453 = vmatpush1.bf16.msra.mxu0 0
    %454 = vmatprep.subr.bf16.mxu0 0
    %455 = vmatpush1.bf16.msra.mxu0 0
    %456 = vmatprep.subr.bf16.mxu0 0
    %457 = vmatpush1.bf16.msra.mxu0 0
    %458 = vmatprep.subr.bf16.mxu0 0
    %459 = vmatpush1.bf16.msra.mxu0 0
    %460 = vmatprep.subr.bf16.mxu0 0
    %461 = vmatpush1.bf16.msra.mxu0 0
    %462 = vmatprep.mubr.bf16.mxu0 0
    %463 = vmatmul.mubr.bf16.gmra.mrb[0].mxu0 %v359
    %v464 = vpop.f32.mrb[0].mxu0
    %v465 = vadd.f32 %v380, %v464
    %v466 = vpop.f32.mrb[0].mxu0
    %v467 = vpop.f32.mrb[0].mxu0
    %v468 = vadd.f32 %v380, %v467
    %v469 = vpop.f32.mrb[0].mxu0
    %470 = vdwg.mxu0
    %v471 = vmul.f32 %v465, 0.3
    %v472 = vmul.f32 %v468, 0.3
    %v473 = vadd.f32 %v229, %v471
    %v474 = vadd.f32 %v230, %v472
    %s475 = scalar_lea.vmem %s4, 1
    %v476 = vld [vmem:[%s475] sm:$0x1]
    %s477 = scalar_lea.vmem %s6, 1
    %v478 = vld [vmem:[%s477] sm:$0x1]
    %v479 = vpack.c.bf16 %v474, %v473
    %s480 = scalar_lea.vmem [#allocation7], 64
    %v481 = vld [vmem:[%s480] sm:$0xf]
    %v482 = vld [vmem:[%s480 + $0x4] sm:$0xf]
    %v483 = vld [vmem:[%s480 + $0x8] sm:$0xf]
    %v484 = vld [vmem:[%s480 + $0xc] sm:$0xf]
    %v485 = vld [vmem:[%s480 + $0x10] sm:$0xf]
    %v486 = vld [vmem:[%s480 + $0x14] sm:$0xf]
    %v487 = vld [vmem:[%s480 + $0x18] sm:$0xf]
    %v488 = vld [vmem:[%s480 + $0x1c] sm:$0xf]
    %v489 = vld [vmem:[%s480 + $0x20] sm:$0xf]
    %v490 = vld [vmem:[%s480 + $0x24] sm:$0xf]
    %v491 = vld [vmem:[%s480 + $0x28] sm:$0xf]
    %v492 = vld [vmem:[%s480 + $0x2c] sm:$0xf]
    %v493 = vld [vmem:[%s480 + $0x30] sm:$0xf]
    %v494 = vld [vmem:[%s480 + $0x34] sm:$0xf]
    %v495 = vld [vmem:[%s480 + $0x38] sm:$0xf]
    %v496 = vld [vmem:[%s480 + $0x3c] sm:$0xf]
    %v498 = vlaneseq
    %v499 = vshrl.u32 %v498, 7
    %v500 = vsub.s32 0, %v499
    %v501 = vrot.slane %v476, %v500
    %v519 = vunpack.c.l.b16 %v481
    %v520 = vunpack.c.l.b16 %v482
    %v521 = vunpack.c.l.b16 %v483
    %v522 = vunpack.c.l.b16 %v484
    %v523 = vunpack.c.l.b16 %v485
    %v524 = vunpack.c.l.b16 %v486
    %v525 = vunpack.c.l.b16 %v487
    %v526 = vunpack.c.l.b16 %v488
    %v527 = vunpack.c.l.b16 %v489
    %v528 = vunpack.c.l.b16 %v490
    %v529 = vunpack.c.l.b16 %v491
    %v530 = vunpack.c.l.b16 %v492
    %v531 = vunpack.c.l.b16 %v493
    %v532 = vunpack.c.l.b16 %v494
    %v533 = vunpack.c.l.b16 %v495
    %v534 = vunpack.c.l.b16 %v496
    %v535 = vpack.c.b16 %v520, %v519
    %v536 = vpack.c.b16 %v522, %v521
    %v537 = vpack.c.b16 %v524, %v523
    %v538 = vpack.c.b16 %v526, %v525
    %v539 = vpack.c.b16 %v528, %v527
    %v540 = vpack.c.b16 %v530, %v529
    %v541 = vpack.c.b16 %v532, %v531
    %v542 = vpack.c.b16 %v534, %v533
    %551 = vmatprep.subr.bf16.mxu0 0
    %552 = vmatpush1.bf16.msra.mxu0 %v535
    %553 = vmatprep.subr.bf16.mxu0 0
    %554 = vmatpush1.bf16.msra.mxu0 %v536
    %555 = vmatprep.subr.bf16.mxu0 0
    %556 = vmatpush1.bf16.msra.mxu0 %v537
    %557 = vmatprep.subr.bf16.mxu0 0
    %558 = vmatpush1.bf16.msra.mxu0 %v538
    %559 = vmatprep.subr.bf16.mxu0 0
    %560 = vmatpush1.bf16.msra.mxu0 %v539
    %561 = vmatprep.subr.bf16.mxu0 0
    %562 = vmatpush1.bf16.msra.mxu0 %v540
    %563 = vmatprep.subr.bf16.mxu0 0
    %564 = vmatpush1.bf16.msra.mxu0 %v541
    %565 = vmatprep.subr.bf16.mxu0 0
    %566 = vmatpush1.bf16.msra.mxu0 %v542
    %567 = vmatprep.subr.bf16.mxu0 0
    %568 = vmatpush1.bf16.msra.mxu0 0
    %569 = vmatprep.subr.bf16.mxu0 0
    %570 = vmatpush1.bf16.msra.mxu0 0
    %571 = vmatprep.subr.bf16.mxu0 0
    %572 = vmatpush1.bf16.msra.mxu0 0
    %573 = vmatprep.subr.bf16.mxu0 0
    %574 = vmatpush1.bf16.msra.mxu0 0
    %575 = vmatprep.subr.bf16.mxu0 0
    %576 = vmatpush1.bf16.msra.mxu0 0
    %577 = vmatprep.subr.bf16.mxu0 0
    %578 = vmatpush1.bf16.msra.mxu0 0
    %579 = vmatprep.subr.bf16.mxu0 0
    %580 = vmatpush1.bf16.msra.mxu0 0
    %581 = vmatprep.subr.bf16.mxu0 0
    %582 = vmatpush1.bf16.msra.mxu0 0
    %583 = vmatprep.mubr.bf16.mxu0 0
    %584 = vmatmul.mubr.bf16.gmra.mrb[0].mxu0 %v479
    %v585 = vpop.f32.mrb[0].mxu0
    %v586 = vadd.f32 %v501, %v585
    %v587 = vpop.f32.mrb[0].mxu0
    %v588 = vpop.f32.mrb[0].mxu0
    %v589 = vadd.f32 %v501, %v588
    %v590 = vpop.f32.mrb[0].mxu0
    %591 = vdwg.mxu0
    %v592 = vxor.u32 %v586, 2147483648
    %v593 = vxor.u32 %v589, 2147483648
    %v594 = vmul.f32 %v592, 1.442695
    %v595 = vpow.pop %v594
    %v596 = vmul.f32 %v593, 1.442695
    %v597 = vpow.pop %v596
    %v598 = vadd.f32 %v595, 1.0
    %v599 = vadd.f32 %v597, 1.0
    %v600 = vrcp.pop %v598
    %v601 = vmul.f32 1.0, %v600
    %v602 = vrcp.pop %v599
    %v603 = vmul.f32 1.0, %v602
    %v604 = vmul.f32 %v586, %v601
    %v605 = vmul.f32 %v589, %v603
    %v606 = vpack.c.bf16 %v605, %v604
    %s607 = scalar_lea.vmem [#allocation8], 64
    %v608 = vld [vmem:[%s607] sm:$0xf]
    %v609 = vld [vmem:[%s607 + $0x4] sm:$0xf]
    %v610 = vld [vmem:[%s607 + $0x8] sm:$0xf]
    %v611 = vld [vmem:[%s607 + $0xc] sm:$0xf]
    %v612 = vld [vmem:[%s607 + $0x10] sm:$0xf]
    %v613 = vld [vmem:[%s607 + $0x14] sm:$0xf]
    %v614 = vld [vmem:[%s607 + $0x18] sm:$0xf]
    %v615 = vld [vmem:[%s607 + $0x1c] sm:$0xf]
    %v616 = vld [vmem:[%s607 + $0x20] sm:$0xf]
    %v617 = vld [vmem:[%s607 + $0x24] sm:$0xf]
    %v618 = vld [vmem:[%s607 + $0x28] sm:$0xf]
    %v619 = vld [vmem:[%s607 + $0x2c] sm:$0xf]
    %v620 = vld [vmem:[%s607 + $0x30] sm:$0xf]
    %v621 = vld [vmem:[%s607 + $0x34] sm:$0xf]
    %v622 = vld [vmem:[%s607 + $0x38] sm:$0xf]
    %v623 = vld [vmem:[%s607 + $0x3c] sm:$0xf]
    %v625 = vlaneseq
    %v626 = vshrl.u32 %v625, 7
    %v627 = vsub.s32 0, %v626
    %v628 = vrot.slane %v478, %v627
    %v646 = vunpack.c.l.b16 %v608
    %v647 = vunpack.c.l.b16 %v609
    %v648 = vunpack.c.l.b16 %v610
    %v649 = vunpack.c.l.b16 %v611
    %v650 = vunpack.c.l.b16 %v612
    %v651 = vunpack.c.l.b16 %v613
    %v652 = vunpack.c.l.b16 %v614
    %v653 = vunpack.c.l.b16 %v615
    %v654 = vunpack.c.l.b16 %v616
    %v655 = vunpack.c.l.b16 %v617
    %v656 = vunpack.c.l.b16 %v618
    %v657 = vunpack.c.l.b16 %v619
    %v658 = vunpack.c.l.b16 %v620
    %v659 = vunpack.c.l.b16 %v621
    %v660 = vunpack.c.l.b16 %v622
    %v661 = vunpack.c.l.b16 %v623
    %v662 = vpack.c.b16 %v647, %v646
    %v663 = vpack.c.b16 %v649, %v648
    %v664 = vpack.c.b16 %v651, %v650
    %v665 = vpack.c.b16 %v653, %v652
    %v666 = vpack.c.b16 %v655, %v654
    %v667 = vpack.c.b16 %v657, %v656
    %v668 = vpack.c.b16 %v659, %v658
    %v669 = vpack.c.b16 %v661, %v660
    %678 = vmatprep.subr.bf16.mxu0 0
    %679 = vmatpush1.bf16.msra.mxu0 %v662
    %680 = vmatprep.subr.bf16.mxu0 0
    %681 = vmatpush1.bf16.msra.mxu0 %v663
    %682 = vmatprep.subr.bf16.mxu0 0
    %683 = vmatpush1.bf16.msra.mxu0 %v664
    %684 = vmatprep.subr.bf16.mxu0 0
    %685 = vmatpush1.bf16.msra.mxu0 %v665
    %686 = vmatprep.subr.bf16.mxu0 0
    %687 = vmatpush1.bf16.msra.mxu0 %v666
    %688 = vmatprep.subr.bf16.mxu0 0
    %689 = vmatpush1.bf16.msra.mxu0 %v667
    %690 = vmatprep.subr.bf16.mxu0 0
    %691 = vmatpush1.bf16.msra.mxu0 %v668
    %692 = vmatprep.subr.bf16.mxu0 0
    %693 = vmatpush1.bf16.msra.mxu0 %v669
    %694 = vmatprep.subr.bf16.mxu0 0
    %695 = vmatpush1.bf16.msra.mxu0 0
    %696 = vmatprep.subr.bf16.mxu0 0
    %697 = vmatpush1.bf16.msra.mxu0 0
    %698 = vmatprep.subr.bf16.mxu0 0
    %699 = vmatpush1.bf16.msra.mxu0 0
    %700 = vmatprep.subr.bf16.mxu0 0
    %701 = vmatpush1.bf16.msra.mxu0 0
    %702 = vmatprep.subr.bf16.mxu0 0
    %703 = vmatpush1.bf16.msra.mxu0 0
    %704 = vmatprep.subr.bf16.mxu0 0
    %705 = vmatpush1.bf16.msra.mxu0 0
    %706 = vmatprep.subr.bf16.mxu0 0
    %707 = vmatpush1.bf16.msra.mxu0 0
    %708 = vmatprep.subr.bf16.mxu0 0
    %709 = vmatpush1.bf16.msra.mxu0 0
    %710 = vmatprep.mubr.bf16.mxu0 0
    %711 = vmatmul.mubr.bf16.gmra.mrb[0].mxu0 %v606
    %v712 = vpop.f32.mrb[0].mxu0
    %v713 = vadd.f32 %v628, %v712
    %v714 = vpop.f32.mrb[0].mxu0
    %v715 = vpop.f32.mrb[0].mxu0
    %v716 = vadd.f32 %v628, %v715
    %v717 = vpop.f32.mrb[0].mxu0
    %718 = vdwg.mxu0
    %v719 = vmul.f32 %v713, 0.3
    %v720 = vmul.f32 %v716, 0.3
    %v721 = vadd.f32 %v473, %v719
    %v722 = vadd.f32 %v474, %v720
    %s723 = scalar_lea.vmem %s4, 2
    %v724 = vld [vmem:[%s723] sm:$0x1]
    %s725 = scalar_lea.vmem %s6, 2
    %v726 = vld [vmem:[%s725] sm:$0x1]
    %v727 = vpack.c.bf16 %v722, %v721
    %s728 = scalar_lea.vmem [#allocation7], 128
    %v729 = vld [vmem:[%s728] sm:$0xf]
    %v730 = vld [vmem:[%s728 + $0x4] sm:$0xf]
    %v731 = vld [vmem:[%s728 + $0x8] sm:$0xf]
    %v732 = vld [vmem:[%s728 + $0xc] sm:$0xf]
    %v733 = vld [vmem:[%s728 + $0x10] sm:$0xf]
    %v734 = vld [vmem:[%s728 + $0x14] sm:$0xf]
    %v735 = vld [vmem:[%s728 + $0x18] sm:$0xf]
    %v736 = vld [vmem:[%s728 + $0x1c] sm:$0xf]
    %v737 = vld [vmem:[%s728 + $0x20] sm:$0xf]
    %v738 = vld [vmem:[%s728 + $0x24] sm:$0xf]
    %v739 = vld [vmem:[%s728 + $0x28] sm:$0xf]
    %v740 = vld [vmem:[%s728 + $0x2c] sm:$0xf]
    %v741 = vld [vmem:[%s728 + $0x30] sm:$0xf]
    %v742 = vld [vmem:[%s728 + $0x34] sm:$0xf]
    %v743 = vld [vmem:[%s728 + $0x38] sm:$0xf]
    %v744 = vld [vmem:[%s728 + $0x3c] sm:$0xf]
    %v746 = vlaneseq
    %v747 = vshrl.u32 %v746, 7
    %v748 = vsub.s32 0, %v747
    %v749 = vrot.slane %v724, %v748
    %v767 = vunpack.c.l.b16 %v729
    %v768 = vunpack.c.l.b16 %v730
    %v769 = vunpack.c.l.b16 %v731
    %v770 = vunpack.c.l.b16 %v732
    %v771 = vunpack.c.l.b16 %v733
    %v772 = vunpack.c.l.b16 %v734
    %v773 = vunpack.c.l.b16 %v735
    %v774 = vunpack.c.l.b16 %v736
    %v775 = vunpack.c.l.b16 %v737
    %v776 = vunpack.c.l.b16 %v738
    %v777 = vunpack.c.l.b16 %v739
    %v778 = vunpack.c.l.b16 %v740
    %v779 = vunpack.c.l.b16 %v741
    %v780 = vunpack.c.l.b16 %v742
    %v781 = vunpack.c.l.b16 %v743
    %v782 = vunpack.c.l.b16 %v744
    %v783 = vpack.c.b16 %v768, %v767
    %v784 = vpack.c.b16 %v770, %v769
    %v785 = vpack.c.b16 %v772, %v771
    %v786 = vpack.c.b16 %v774, %v773
    %v787 = vpack.c.b16 %v776, %v775
    %v788 = vpack.c.b16 %v778, %v777
    %v789 = vpack.c.b16 %v780, %v779
    %v790 = vpack.c.b16 %v782, %v781
    %799 = vmatprep.subr.bf16.mxu0 0
    %800 = vmatpush1.bf16.msra.mxu0 %v783
    %801 = vmatprep.subr.bf16.mxu0 0
    %802 = vmatpush1.bf16.msra.mxu0 %v784
    %803 = vmatprep.subr.bf16.mxu0 0
    %804 = vmatpush1.bf16.msra.mxu0 %v785
    %805 = vmatprep.subr.bf16.mxu0 0
    %806 = vmatpush1.bf16.msra.mxu0 %v786
    %807 = vmatprep.subr.bf16.mxu0 0
    %808 = vmatpush1.bf16.msra.mxu0 %v787
    %809 = vmatprep.subr.bf16.mxu0 0
    %810 = vmatpush1.bf16.msra.mxu0 %v788
    %811 = vmatprep.subr.bf16.mxu0 0
    %812 = vmatpush1.bf16.msra.mxu0 %v789
    %813 = vmatprep.subr.bf16.mxu0 0
    %814 = vmatpush1.bf16.msra.mxu0 %v790
    %815 = vmatprep.subr.bf16.mxu0 0
    %816 = vmatpush1.bf16.msra.mxu0 0
    %817 = vmatprep.subr.bf16.mxu0 0
    %818 = vmatpush1.bf16.msra.mxu0 0
    %819 = vmatprep.subr.bf16.mxu0 0
    %820 = vmatpush1.bf16.msra.mxu0 0
    %821 = vmatprep.subr.bf16.mxu0 0
    %822 = vmatpush1.bf16.msra.mxu0 0
    %823 = vmatprep.subr.bf16.mxu0 0
    %824 = vmatpush1.bf16.msra.mxu0 0
    %825 = vmatprep.subr.bf16.mxu0 0
    %826 = vmatpush1.bf16.msra.mxu0 0
    %827 = vmatprep.subr.bf16.mxu0 0
    %828 = vmatpush1.bf16.msra.mxu0 0
    %829 = vmatprep.subr.bf16.mxu0 0
    %830 = vmatpush1.bf16.msra.mxu0 0
    %831 = vmatprep.mubr.bf16.mxu0 0
    %832 = vmatmul.mubr.bf16.gmra.mrb[0].mxu0 %v727
    %v833 = vpop.f32.mrb[0].mxu0
    %v834 = vadd.f32 %v749, %v833
    %v835 = vpop.f32.mrb[0].mxu0
    %v836 = vpop.f32.mrb[0].mxu0
    %v837 = vadd.f32 %v749, %v836
    %v838 = vpop.f32.mrb[0].mxu0
    %839 = vdwg.mxu0
    %v840 = vxor.u32 %v834, 2147483648
    %v841 = vxor.u32 %v837, 2147483648
    %v842 = vmul.f32 %v840, 1.442695
    %v843 = vpow.pop %v842
    %v844 = vmul.f32 %v841, 1.442695
    %v845 = vpow.pop %v844
    %v846 = vadd.f32 %v843, 1.0
    %v847 = vadd.f32 %v845, 1.0
    %v848 = vrcp.pop %v846
    %v849 = vmul.f32 1.0, %v848
    %v850 = vrcp.pop %v847
    %v851 = vmul.f32 1.0, %v850
    %v852 = vmul.f32 %v834, %v849
    %v853 = vmul.f32 %v837, %v851
    %v854 = vpack.c.bf16 %v853, %v852
    %s855 = scalar_lea.vmem [#allocation8], 128
    %v856 = vld [vmem:[%s855] sm:$0xf]
    %v857 = vld [vmem:[%s855 + $0x4] sm:$0xf]
    %v858 = vld [vmem:[%s855 + $0x8] sm:$0xf]
    %v859 = vld [vmem:[%s855 + $0xc] sm:$0xf]
    %v860 = vld [vmem:[%s855 + $0x10] sm:$0xf]
    %v861 = vld [vmem:[%s855 + $0x14] sm:$0xf]
    %v862 = vld [vmem:[%s855 + $0x18] sm:$0xf]
    %v863 = vld [vmem:[%s855 + $0x1c] sm:$0xf]
    %v864 = vld [vmem:[%s855 + $0x20] sm:$0xf]
    %v865 = vld [vmem:[%s855 + $0x24] sm:$0xf]
    %v866 = vld [vmem:[%s855 + $0x28] sm:$0xf]
    %v867 = vld [vmem:[%s855 + $0x2c] sm:$0xf]
    %v868 = vld [vmem:[%s855 + $0x30] sm:$0xf]
    %v869 = vld [vmem:[%s855 + $0x34] sm:$0xf]
    %v870 = vld [vmem:[%s855 + $0x38] sm:$0xf]
    %v871 = vld [vmem:[%s855 + $0x3c] sm:$0xf]
    %v873 = vlaneseq
    %v874 = vshrl.u32 %v873, 7
    %v875 = vsub.s32 0, %v874
    %v876 = vrot.slane %v726, %v875
    %v894 = vunpack.c.l.b16 %v856
    %v895 = vunpack.c.l.b16 %v857
    %v896 = vunpack.c.l.b16 %v858
    %v897 = vunpack.c.l.b16 %v859
    %v898 = vunpack.c.l.b16 %v860
    %v899 = vunpack.c.l.b16 %v861
    %v900 = vunpack.c.l.b16 %v862
    %v901 = vunpack.c.l.b16 %v863
    %v902 = vunpack.c.l.b16 %v864
    %v903 = vunpack.c.l.b16 %v865
    %v904 = vunpack.c.l.b16 %v866
    %v905 = vunpack.c.l.b16 %v867
    %v906 = vunpack.c.l.b16 %v868
    %v907 = vunpack.c.l.b16 %v869
    %v908 = vunpack.c.l.b16 %v870
    %v909 = vunpack.c.l.b16 %v871
    %v910 = vpack.c.b16 %v895, %v894
    %v911 = vpack.c.b16 %v897, %v896
    %v912 = vpack.c.b16 %v899, %v898
    %v913 = vpack.c.b16 %v901, %v900
    %v914 = vpack.c.b16 %v903, %v902
    %v915 = vpack.c.b16 %v905, %v904
    %v916 = vpack.c.b16 %v907, %v906
    %v917 = vpack.c.b16 %v909, %v908
    %926 = vmatprep.subr.bf16.mxu0 0
    %927 = vmatpush1.bf16.msra.mxu0 %v910
    %928 = vmatprep.subr.bf16.mxu0 0
    %929 = vmatpush1.bf16.msra.mxu0 %v911
    %930 = vmatprep.subr.bf16.mxu0 0
    %931 = vmatpush1.bf16.msra.mxu0 %v912
    %932 = vmatprep.subr.bf16.mxu0 0
    %933 = vmatpush1.bf16.msra.mxu0 %v913
    %934 = vmatprep.subr.bf16.mxu0 0
    %935 = vmatpush1.bf16.msra.mxu0 %v914
    %936 = vmatprep.subr.bf16.mxu0 0
    %937 = vmatpush1.bf16.msra.mxu0 %v915
    %938 = vmatprep.subr.bf16.mxu0 0
    %939 = vmatpush1.bf16.msra.mxu0 %v916
    %940 = vmatprep.subr.bf16.mxu0 0
    %941 = vmatpush1.bf16.msra.mxu0 %v917
    %942 = vmatprep.subr.bf16.mxu0 0
    %943 = vmatpush1.bf16.msra.mxu0 0
    %944 = vmatprep.subr.bf16.mxu0 0
    %945 = vmatpush1.bf16.msra.mxu0 0
    %946 = vmatprep.subr.bf16.mxu0 0
    %947 = vmatpush1.bf16.msra.mxu0 0
    %948 = vmatprep.subr.bf16.mxu0 0
    %949 = vmatpush1.bf16.msra.mxu0 0
    %950 = vmatprep.subr.bf16.mxu0 0
    %951 = vmatpush1.bf16.msra.mxu0 0
    %952 = vmatprep.subr.bf16.mxu0 0
    %953 = vmatpush1.bf16.msra.mxu0 0
    %954 = vmatprep.subr.bf16.mxu0 0
    %955 = vmatpush1.bf16.msra.mxu0 0
    %956 = vmatprep.subr.bf16.mxu0 0
    %957 = vmatpush1.bf16.msra.mxu0 0
    %958 = vmatprep.mubr.bf16.mxu0 0
    %959 = vmatmul.mubr.bf16.gmra.mrb[0].mxu0 %v854
    %v960 = vpop.f32.mrb[0].mxu0
    %v961 = vadd.f32 %v876, %v960
    %v962 = vpop.f32.mrb[0].mxu0
    %v963 = vpop.f32.mrb[0].mxu0
    %v964 = vadd.f32 %v876, %v963
    %v965 = vpop.f32.mrb[0].mxu0
    %966 = vdwg.mxu0
    %v967 = vmul.f32 %v961, 0.3
    %v968 = vmul.f32 %v964, 0.3
    %v969 = vadd.f32 %v721, %v967
    %v970 = vadd.f32 %v722, %v968
    %v971 = vpack.c.bf16 %v970, %v969
    %v972 = vld [vmem:[#allocation10] sm:$0xf]
    %v973 = vld [vmem:[#allocation10 + $0x4] sm:$0xf]
    %v974 = vld [vmem:[#allocation10 + $0x8] sm:$0xf]
    %v975 = vld [vmem:[#allocation10 + $0xc] sm:$0xf]
    %v976 = vld [vmem:[#allocation10 + $0x10] sm:$0xf]
    %v977 = vld [vmem:[#allocation10 + $0x14] sm:$0xf]
    %v978 = vld [vmem:[#allocation10 + $0x18] sm:$0xf]
    %v979 = vld [vmem:[#allocation10 + $0x1c] sm:$0xf]
    %v980 = vld [vmem:[#allocation10 + $0x20] sm:$0xf]
    %v981 = vld [vmem:[#allocation10 + $0x24] sm:$0xf]
    %v982 = vld [vmem:[#allocation10 + $0x28] sm:$0xf]
    %v983 = vld [vmem:[#allocation10 + $0x2c] sm:$0xf]
    %v984 = vld [vmem:[#allocation10 + $0x30] sm:$0xf]
    %v985 = vld [vmem:[#allocation10 + $0x34] sm:$0xf]
    %v986 = vld [vmem:[#allocation10 + $0x38] sm:$0xf]
    %v987 = vld [vmem:[#allocation10 + $0x3c] sm:$0xf]
    %v988 = vld [vmem:[%s8] sm:$0x1]
    %v990 = vlaneseq
    %v991 = vshrl.u32 %v990, 7
    %v992 = vsub.s32 0, %v991
    %v993 = vrot.slane %v988, %v992
    %v1011 = vunpack.c.l.b16 %v972
    %v1012 = vunpack.c.l.b16 %v973
    %v1013 = vunpack.c.l.b16 %v974
    %v1014 = vunpack.c.l.b16 %v975
    %v1015 = vunpack.c.l.b16 %v976
    %v1016 = vunpack.c.l.b16 %v977
    %v1017 = vunpack.c.l.b16 %v978
    %v1018 = vunpack.c.l.b16 %v979
    %v1019 = vunpack.c.l.b16 %v980
    %v1020 = vunpack.c.l.b16 %v981
    %v1021 = vunpack.c.l.b16 %v982
    %v1022 = vunpack.c.l.b16 %v983
    %v1023 = vunpack.c.l.b16 %v984
    %v1024 = vunpack.c.l.b16 %v985
    %v1025 = vunpack.c.l.b16 %v986
    %v1026 = vunpack.c.l.b16 %v987
    %v1027 = vpack.c.b16 %v1012, %v1011
    %v1028 = vpack.c.b16 %v1014, %v1013
    %v1029 = vpack.c.b16 %v1016, %v1015
    %v1030 = vpack.c.b16 %v1018, %v1017
    %v1031 = vpack.c.b16 %v1020, %v1019
    %v1032 = vpack.c.b16 %v1022, %v1021
    %v1033 = vpack.c.b16 %v1024, %v1023
    %v1034 = vpack.c.b16 %v1026, %v1025
    %1043 = vmatprep.subr.bf16.mxu0 0
    %1044 = vmatpush1.bf16.msra.mxu0 %v1027
    %1045 = vmatprep.subr.bf16.mxu0 0
    %1046 = vmatpush1.bf16.msra.mxu0 %v1028
    %1047 = vmatprep.subr.bf16.mxu0 0
    %1048 = vmatpush1.bf16.msra.mxu0 %v1029
    %1049 = vmatprep.subr.bf16.mxu0 0
    %1050 = vmatpush1.bf16.msra.mxu0 %v1030
    %1051 = vmatprep.subr.bf16.mxu0 0
    %1052 = vmatpush1.bf16.msra.mxu0 %v1031
    %1053 = vmatprep.subr.bf16.mxu0 0
    %1054 = vmatpush1.bf16.msra.mxu0 %v1032
    %1055 = vmatprep.subr.bf16.mxu0 0
    %1056 = vmatpush1.bf16.msra.mxu0 %v1033
    %1057 = vmatprep.subr.bf16.mxu0 0
    %1058 = vmatpush1.bf16.msra.mxu0 %v1034
    %1059 = vmatprep.subr.bf16.mxu0 0
    %1060 = vmatpush1.bf16.msra.mxu0 0
    %1061 = vmatprep.subr.bf16.mxu0 0
    %1062 = vmatpush1.bf16.msra.mxu0 0
    %1063 = vmatprep.subr.bf16.mxu0 0
    %1064 = vmatpush1.bf16.msra.mxu0 0
    %1065 = vmatprep.subr.bf16.mxu0 0
    %1066 = vmatpush1.bf16.msra.mxu0 0
    %1067 = vmatprep.subr.bf16.mxu0 0
    %1068 = vmatpush1.bf16.msra.mxu0 0
    %1069 = vmatprep.subr.bf16.mxu0 0
    %1070 = vmatpush1.bf16.msra.mxu0 0
    %1071 = vmatprep.subr.bf16.mxu0 0
    %1072 = vmatpush1.bf16.msra.mxu0 0
    %1073 = vmatprep.subr.bf16.mxu0 0
    %1074 = vmatpush1.bf16.msra.mxu0 0
    %1075 = vmatprep.mubr.bf16.mxu0 0
    %1076 = vmatmul.mubr.bf16.gmra.mrb[0].mxu0 %v971
    %v1077 = vpop.f32.mrb[0].mxu0
    %v1078 = vadd.f32 %v993, %v1077
    %v1079 = vpop.f32.mrb[0].mxu0
    %v1080 = vpop.f32.mrb[0].mxu0
    %v1081 = vadd.f32 %v993, %v1080
    %v1082 = vpop.f32.mrb[0].mxu0
    %1083 = vdwg.mxu0
    %1084 = vst [vmem:[#allocation11] sm:$0xff] %v1078
    %1085 = vst [vmem:[#allocation11 + $0x8] sm:$0xff] %v1081
    // Predicated region
    $region58: #{tpu_custom_call.1} parent=1 // pred_check
      _
    $region59: #{tpu_custom_call.1} parent=1 // pred_check_branch
      %1087 = sbr.rel (0) target = $region61
    $region60: #{tpu_custom_call.1} parent=1 // pred_region
      %s1089 = ssub.s32 256, 256
      %1090 = vsyncadd [#allocation4], %s1089
      %s1091 = sshll.u32 [#allocation11], 4
      %s1092 = int_to_ptr.vmem [resolvable:$true] %s1091
      %1097 = dma.vmem_to_hbm [thread:$0]  %s1092, 256, %s9, [#allocation4], 128, 128, 8
    $region61: #{tpu_custom_call.1} parent=1 // pred_fallthru
      _
    // Predicated region
    $region62: #{tpu_custom_call.1} parent=1 // pred_check
      _
    $region63: #{tpu_custom_call.1} parent=1 // pred_check_branch
      %1099 = sbr.rel (0) target = $region65
    $region64: #{tpu_custom_call.1} parent=1 // pred_region
      %1100 = dma.done [#allocation4], 256
    $region65: #{tpu_custom_call.1} parent=1 // pred_fallthru
      _
    %1101 = vsyncpa [#allocation3], 1
    %1102 = vsyncpa [#allocation6], 1
    %1103 = vsyncpa [#allocation9], 1
    %1104 = vsyncpa [#allocation4], 1

</llo_original>
